<compile_context>
chip_gen: v7x
topology: tpu7x:2x2x1
jax: 0.10.0
libtpu: 0.0.40
codegen_flags: <defaults>
</compile_context>

<pallas_src>
import math

import jax
import jax.numpy as jnp
from jax.experimental import pallas as pl
from jax.experimental.pallas import tpu as pltpu


def _grid_embed_kernel(x_ref, w_ref, b_ref, o_ref):
    # x_ref : (TMp, Kp)  pair-packed grid features            (tiled over rows)
    # w_ref : (Kp, Ep)   block-diagonal packed Linear weight  (resident)
    # b_ref : (1, Ep)    lane-tiled bias, f32                 (resident)
    # o_ref : (TMp, Ep)  lane-dense packed output (Ep is a multiple of 128)
    x = x_ref[...]
    w = w_ref[...]
    if x.dtype != w.dtype:
        # Static dtype check: cast on the VMEM tile only — the HBM read of x
        # stays in the caller's dtype (e.g. bf16 reads stay half-width).
        x = x.astype(w.dtype)
    acc = jnp.dot(x, w, preferred_element_type=jnp.float32)
    o_ref[...] = (acc + b_ref[...]).astype(o_ref.dtype)


def lane_dense_pack(embed):
    """Smallest row-pack so the packed output width is a multiple of 128 lanes."""
    # NOTE: bumping to max(pack, 256 // embed) would fill the 256-wide MXU on
    # v6e/v7x, but the kernel is HBM-bound so the gain is <5%; kept minimal.
    return 128 // math.gcd(embed, 128)


def pack_grid_embed_params(weight, bias, *, pack=None, param_dtype=jnp.float32):
    """Build (once, outside the hot loop) the packed weight/bias.

    weight: (E, K) nn.Linear weight, bias: (E,).
    Returns (w_packed (pack*K, pack*E), b_packed (1, pack*E)).
    """
    embed, _ = weight.shape
    if pack is None:
        pack = lane_dense_pack(embed)
    wt = weight.T.astype(param_dtype)                                  # (K, E)
    w_packed = jnp.kron(jnp.eye(pack, dtype=param_dtype), wt)          # (Kp, Ep)
    b_packed = jnp.tile(bias.astype(jnp.float32), (pack,)).reshape(1, pack * embed)
    return w_packed, b_packed


_MIN_TM_PACKED = 256    # floor on packed rows per tile (keeps DMA >> step overhead)
_MIN_GRID_STEPS = 4     # >= 2 pipelined steps per TensorCore after v7x megacore split


def grid_embedding_forward(grid_features, weight, bias, *,
                           block_rows=8192,
                           pack=None,
                           compute_dtype=None,
                           out_dtype=jnp.float32,
                           packed_params=None):
    """grid_features: (..., 49); weight: (E, 49); bias: (E,) -> (..., E).

    compute_dtype: dtype of the packed weight / MXU operands (default: x dtype).
    out_dtype:     stored output dtype (default f32 = PyTorch parity; bf16 cuts
                   output HBM bytes ~2x on this bandwidth-bound kernel).
    packed_params: optional (w_packed, b_packed) from pack_grid_embed_params to
                   hoist the packing glue out of repeated forward calls.
    """
    embed, in_features = weight.shape
    lead_shape = grid_features.shape[:-1]

    x2d = grid_features.reshape(-1, in_features)
    m_rows = x2d.shape[0]

    if compute_dtype is None:
        compute_dtype = x2d.dtype          # never cast x in the wrapper
    if pack is None:
        pack = lane_dense_pack(embed)      # pack=2 for E=64

    # XLA fallback: small / ragged M where the Pallas pipeline cannot sustain
    # >= _MIN_GRID_STEPS tiles of >= _MIN_TM_PACKED packed rows (a 1-step
    # pallas_call has no prefetch/writeback overlap and pays launch overhead).
    if (m_rows % pack) != 0 or (m_rows // pack) < _MIN_GRID_STEPS * _MIN_TM_PACKED:
        out = (x2d.astype(jnp.float32) @ weight.T.astype(jnp.float32)
               + bias.astype(jnp.float32)[None, :])
        return out.astype(out_dtype).reshape(*lead_shape, embed)

    mp = m_rows // pack
    kp = pack * in_features
    ep = pack * embed

    if packed_params is None:
        w_packed, b_packed = pack_grid_embed_params(
            weight, bias, pack=pack, param_dtype=compute_dtype)
    else:
        w_packed, b_packed = packed_params
    assert w_packed.shape == (kp, ep) and b_packed.shape == (1, ep)

    # Free, contiguous row-major reshape of the dominant operand; NO dtype cast
    # (avoids an extra full HBM read+write pass outside the kernel).
    x_packed = x2d.reshape(mp, kp)

    # Tile sizing: as large as block_rows allows, but always leave at least
    # _MIN_GRID_STEPS grid steps so DMA of tile i+1 overlaps compute of tile i
    # (>= 2 steps per TC on v7x).  Multiple of 8 sublanes.
    tm = min(block_rows // pack, mp // _MIN_GRID_STEPS)
    tm = max(_MIN_TM_PACKED, (tm // 8) * 8)
    grid_m = pl.cdiv(mp, tm)

    x_itemsize = jnp.dtype(x_packed.dtype).itemsize
    w_itemsize = jnp.dtype(w_packed.dtype).itemsize
    o_itemsize = jnp.dtype(out_dtype).itemsize
    cost = pl.CostEstimate(
        flops=2 * mp * kp * ep,            # actual packed matmul (incl. blockdiag zeros)
        transcendentals=0,
        bytes_accessed=(mp * kp * x_itemsize
                        + kp * ep * w_itemsize
                        + ep * 4
                        + mp * ep * o_itemsize),
    )

    out_packed = pl.pallas_call(
        _grid_embed_kernel,
        out_shape=jax.ShapeDtypeStruct((mp, ep), out_dtype),
        grid=(grid_m,),
        in_specs=[
            pl.BlockSpec((tm, kp), lambda i: (i, 0)),    # x tile  (pipelined)
            pl.BlockSpec((kp, ep), lambda i: (0, 0)),    # weight  (resident)
            pl.BlockSpec((1, ep), lambda i: (0, 0)),     # bias    (resident)
        ],
        out_specs=pl.BlockSpec((tm, ep), lambda i: (i, 0)),
        compiler_params=pltpu.CompilerParams(
            dimension_semantics=("parallel",),           # shards M over v7x's 2 TCs
        ),
        cost_estimate=cost,
    )(x_packed, w_packed, b_packed)

    # (Mp, Ep) row-major is bit-identical to (M, E); reshapes are free.
    return out_packed.reshape(m_rows, embed).reshape(*lead_shape, embed)


def init_params(key, grid_embed_size=64, in_features=49):
    # Mimic nn.Linear default init: U(-1/sqrt(fan_in), 1/sqrt(fan_in)).
    kw, kb = jax.random.split(key)
    bound = 1.0 / jnp.sqrt(jnp.float32(in_features))
    weight = jax.random.uniform(
        kw, (grid_embed_size, in_features), jnp.float32, -bound, bound)
    bias = jax.random.uniform(
        kb, (grid_embed_size,), jnp.float32, -bound, bound)
    return weight, bias


if __name__ == "__main__":
    key = jax.random.PRNGKey(0)
    k_small, k_big, k_rag, k_param = jax.random.split(key, 4)

    E, IN_F = 64, 49
    weight, bias = init_params(k_param, grid_embed_size=E, in_features=IN_F)
    ref_fn = lambda x: x @ weight.T + bias

    # Case 1: module-default small shape (batch=2, 8 grid cells) -> XLA fast path.
    x_small = jax.random.normal(k_small, (2, 8, IN_F), jnp.float32)
    out_small = jax.block_until_ready(grid_embedding_forward(x_small, weight, bias))
    assert out_small.shape == (2, 8, E), out_small.shape
    assert jnp.allclose(out_small, ref_fn(x_small), atol=1e-5, rtol=1e-5)

    # Hoist packed weight/bias construction out of the per-call forward.
    packed = pack_grid_embed_params(weight, bias)

    # Case 2: larger M -> tiled Pallas kernel (M=8192 rows, mp=4096, tm=1024, 4 steps).
    x_big = jax.random.normal(k_big, (2, 4096, IN_F), jnp.float32)
    out_big = jax.block_until_ready(
        grid_embedding_forward(x_big, weight, bias, packed_params=packed))
    assert out_big.shape == (2, 4096, E), out_big.shape
    assert jnp.allclose(out_big, ref_fn(x_big), atol=1e-4, rtol=1e-4)

    # Case 3: ragged M (mp % tm != 0) -> exercises the masked partial final tile.
    x_rag = jax.random.normal(k_rag, (2, 2200, IN_F), jnp.float32)
    out_rag = jax.block_until_ready(
        grid_embedding_forward(x_rag, weight, bias, packed_params=packed))
    assert out_rag.shape == (2, 2200, E), out_rag.shape
    assert jnp.allclose(out_rag, ref_fn(x_rag), atol=1e-4, rtol=1e-4)

    # Case 4: bf16 activations read straight from HBM (no wrapper cast);
    # in-kernel cast to the f32 weight dtype keeps f32 numerics.
    x_bf = x_big.astype(jnp.bfloat16)
    out_bf_in = jax.block_until_ready(
        grid_embedding_forward(x_bf, weight, bias, compute_dtype=jnp.float32))
    ref_bf_in = x_bf.astype(jnp.float32) @ weight.T + bias
    assert jnp.allclose(out_bf_in, ref_bf_in, atol=1e-4, rtol=1e-4)

    # Case 5: optional bf16 store (f32 accumulation in-kernel, ~2x fewer output bytes).
    out_bf16 = jax.block_until_ready(
        grid_embedding_forward(x_big, weight, bias, packed_params=packed,
                               out_dtype=jnp.bfloat16))
    assert out_bf16.dtype == jnp.bfloat16
    assert jnp.allclose(out_bf16.astype(jnp.float32), ref_fn(x_big),
                        atol=2e-2, rtol=2e-2)

    print("KERNEL_OK")
</pallas_src>

<mosaic_0001>
module attributes {stable_mosaic.version = 11 : i64} {
  func.func @_grid_embed_kernel(%arg0: i32, %arg1: memref<1024x98xf32, #tpu.memory_space<vmem>>, %arg2: memref<98x128xf32, #tpu.memory_space<vmem>>, %arg3: memref<1x128xf32, #tpu.memory_space<vmem>>, %arg4: memref<1024x128xf32, #tpu.memory_space<vmem>>) attributes {dimension_semantics = [#tpu.dimension_semantics<parallel>], iteration_bounds = array<i64: 4>, scalar_prefetch = 0 : i64, scratch_operands = 0 : i64, tpu.core_type = #tpu.core_type<tc>, window_params = [{transform_indices = @transform_0, window_bounds = array<i64: 1024, 98>}, {pipeline_mode = #tpu.pipeline_mode<synchronous>, transform_indices = @transform_1, window_bounds = array<i64: 98, 128>}, {pipeline_mode = #tpu.pipeline_mode<synchronous>, transform_indices = @transform_2, window_bounds = array<i64: 1, 128>}, {transform_indices = @transform_3, window_bounds = array<i64: 1024, 128>}]} {
    %c0 = arith.constant 0 : index
    %c0_0 = arith.constant 0 : index
    %0 = vector.load %arg1[%c0, %c0_0] : memref<1024x98xf32, #tpu.memory_space<vmem>>, vector<1024x98xf32>
    %c0_1 = arith.constant 0 : index
    %c0_2 = arith.constant 0 : index
    %1 = vector.load %arg2[%c0_1, %c0_2] : memref<98x128xf32, #tpu.memory_space<vmem>>, vector<98x128xf32>
    %cst = arith.constant dense<0.000000e+00> : vector<1024x128xf32>
    %2 = tpu.matmul %0, %1, %cst {dimension_numbers = #tpu.dot_dimension_numbers<[1], [0], [0], [1], [0, 0, 1, 1], [], []>} : vector<1024x98xf32>, vector<98x128xf32>, vector<1024x128xf32> -> vector<1024x128xf32>
    %c0_3 = arith.constant 0 : index
    %c0_4 = arith.constant 0 : index
    %3 = vector.load %arg3[%c0_3, %c0_4] : memref<1x128xf32, #tpu.memory_space<vmem>>, vector<1x128xf32>
    %4 = vector.broadcast %3 : vector<1x128xf32> to vector<1024x128xf32>
    %5 = arith.addf %2, %4 : vector<1024x128xf32>
    %c0_5 = arith.constant 0 : index
    %c0_6 = arith.constant 0 : index
    %6 = vector.load %arg4[%c0_5, %c0_6] : memref<1024x128xf32, #tpu.memory_space<vmem>>, vector<1024x128xf32>
    tpu.vector_store %arg4[%c0_5, %c0_6], %5 {strides = array<i32>} : memref<1024x128xf32, #tpu.memory_space<vmem>>, vector<1024x128xf32>,
    return
  }
  func.func @transform_0(%arg0: i32) -> (i32, i32) {
    %c0_i32 = arith.constant 0 : i32
    %c0_i32_0 = arith.constant 0 : i32
    return %arg0, %c0_i32 : i32, i32
  }
  func.func @transform_1(%arg0: i32) -> (i32, i32) {
    %c0_i32 = arith.constant 0 : i32
    %c0_i32_0 = arith.constant 0 : i32
    %c0_i32_1 = arith.constant 0 : i32
    return %c0_i32, %c0_i32_0 : i32, i32
  }
  func.func @transform_2(%arg0: i32) -> (i32, i32) {
    %c0_i32 = arith.constant 0 : i32
    %c0_i32_0 = arith.constant 0 : i32
    %c0_i32_1 = arith.constant 0 : i32
    return %c0_i32, %c0_i32_0 : i32, i32
  }
  func.func @transform_3(%arg0: i32) -> (i32, i32) {
    %c0_i32 = arith.constant 0 : i32
    %c0_i32_0 = arith.constant 0 : i32
    return %arg0, %c0_i32 : i32, i32
  }
}

</mosaic_0001>

<llo_original>
// kernel: tpu_custom_call.1
$region0: #{tpu_custom_call.1}
  #allocation0 [shape = 'u32[]', space=smem, size = 0x4, offset = 0x4, fixed_abs, tag = 'smem constant byte address 0x4 - core index']
  #allocation1 [shape = 'u32[144,128]{1,0:T(1,128)}', space=vmem, size = 0x12000, scoped, tag = 'internal scratch']
  %s0 = inlined_call_operand.vmem [shape: f32[4096,98], index: 0, kind: input, shape index: {}]
  %s1 = inlined_call_operand.vmem [shape: f32[98,128], index: 1, kind: input, shape index: {}]
  %s2 = inlined_call_operand.vmem [shape: f32[1,128], index: 2, kind: input, shape index: {}]
  %s3 = inlined_call_operand.hbm [shape: f32[4096,128], index: 3, kind: output, shape index: {}]
  %s4 = sld [smem:[#allocation0]]
  $region45: #{tpu_custom_call.1} parent=0
    _
  %s6 = ssub.s32 1, %s4
  %s7 = scalar_select 0, %s6, %s4
  $region1: #{tpu_custom_call.1} parent=0
    #allocation2 [shape = 'u8[1048576]{0}', space=vmem, size = 0x100000, scoped, tag = 'output window, operand 0']
    #allocation3 [shape = 's32[2]{0}', space=sflag, size = 0x8, scoped, tag = 'scoped memory for tpu_custom_call.1']
    %8 = vsyncpa [#allocation3], 0
    %s9 = scalar_lea.sflag [#allocation3], 1
    %10 = vsyncpa %s9, 0
    loop: start=0, step=1, limit=6
    $region2: #{tpu_custom_call.1} parent=1 // loop_pre_header
      _
    $region3: #{tpu_custom_call.1} parent=1 // loop_header
      %s12 = sphi 0, %s16
      %p13 = scmp.ge.s32.totalorder %s12, 6
      %s22 = sphi 0, %s24
      %s25 = sphi 0, %s22
      %s26 = sphi 0, %s25
      %s42 = sphi 0, %s26
      %s46 = sphi 0, %s46
      %s48 = sphi 0, %s46
      %s49 = sphi 0, %s48
      %s63 = sphi 0, %s49
      %s67 = sphi 0, %s67
      %s69 = sphi 0, %s67
      %s70 = sphi 0, %s69
      %s84 = sphi 0, %s70
      %s90 = sphi 0, %s92
      %s93 = sphi 0, %s90
      %s94 = sphi 0, %s93
      %s110 = sphi 0, %s94
    $region4: #{tpu_custom_call.1} parent=1 // loop_header_branch
      %15 = sbr.rel (%p13) target = $region8
    $region5: #{tpu_custom_call.1} parent=1 // loop_body
      %s17 = ssub.s32 %s12, 1
      %s18 = ssub.s32 %s12, 2
      %s19 = sadd.s32 %s12, 1
      %s20 = ssub.s32 %s12, %s19
      %p21 = scmp.eq.s32.totalorder %s20, 0
      %s23 = sadd.s32 %s22, 1
      %s24 = scalar_select %p21, %s22, %s23
      %p27 = pneg %p21
      %p28 = scmp.eq.s32.totalorder %s12, 3
      %p29 = por %p27, %p28
      %p30 = scmp.ne.s32.totalorder %s22, %s25
      %p31 = scmp.eq.s32.totalorder %s12, 0
      %p32 = por %p30, %p31
      %p33 = scmp.ne.s32.totalorder %s22, %s25
      %p34 = scmp.eq.s32.totalorder %s17, 3
      %p35 = por %p33, %p34
      %p36 = scmp.ne.s32.totalorder %s25, %s26
      %p37 = scmp.eq.s32.totalorder %s17, 0
      %p38 = por %p36, %p37
      %p39 = scmp.ne.s32.totalorder %s25, %s26
      %p40 = scmp.eq.s32.totalorder %s18, 3
      %p41 = por %p39, %p40
      %p43 = scmp.ne.s32.totalorder %s26, %s42
      %p44 = scmp.eq.s32.totalorder %s18, 0
      %p45 = por %p43, %p44
      %s47 = sadd.s32 %s46, 1
      %p50 = scmp.eq.s32.totalorder %s12, 3
      %p51 = scmp.ne.s32.totalorder %s46, %s48
      %p52 = scmp.eq.s32.totalorder %s12, 0
      %p53 = por %p51, %p52
      %p54 = scmp.ne.s32.totalorder %s46, %s48
      %p55 = scmp.eq.s32.totalorder %s17, 3
      %p56 = por %p54, %p55
      %p57 = scmp.ne.s32.totalorder %s48, %s49
      %p58 = scmp.eq.s32.totalorder %s17, 0
      %p59 = por %p57, %p58
      %p60 = scmp.ne.s32.totalorder %s48, %s49
      %p61 = scmp.eq.s32.totalorder %s18, 3
      %p62 = por %p60, %p61
      %p64 = scmp.ne.s32.totalorder %s49, %s63
      %p65 = scmp.eq.s32.totalorder %s18, 0
      %p66 = por %p64, %p65
      %s68 = sadd.s32 %s67, 1
      %p71 = scmp.eq.s32.totalorder %s12, 3
      %p72 = scmp.ne.s32.totalorder %s67, %s69
      %p73 = scmp.eq.s32.totalorder %s12, 0
      %p74 = por %p72, %p73
      %p75 = scmp.ne.s32.totalorder %s67, %s69
      %p76 = scmp.eq.s32.totalorder %s17, 3
      %p77 = por %p75, %p76
      %p78 = scmp.ne.s32.totalorder %s69, %s70
      %p79 = scmp.eq.s32.totalorder %s17, 0
      %p80 = por %p78, %p79
      %p81 = scmp.ne.s32.totalorder %s69, %s70
      %p82 = scmp.eq.s32.totalorder %s18, 3
      %p83 = por %p81, %p82
      %p85 = scmp.ne.s32.totalorder %s70, %s84
      %p86 = scmp.eq.s32.totalorder %s18, 0
      %p87 = por %p85, %p86
      %s88 = ssub.s32 %s12, %s19
      %p89 = scmp.eq.s32.totalorder %s88, 0
      %s91 = sadd.s32 %s90, 1
      %s92 = scalar_select %p89, %s90, %s91
      %p95 = pneg %p89
      %p96 = scmp.eq.s32.totalorder %s12, 3
      %p97 = por %p95, %p96
      %p98 = scmp.ne.s32.totalorder %s90, %s93
      %p99 = scmp.eq.s32.totalorder %s12, 0
      %p100 = por %p98, %p99
      %p101 = scmp.ne.s32.totalorder %s90, %s93
      %p102 = scmp.eq.s32.totalorder %s17, 3
      %p103 = por %p101, %p102
      %p104 = scmp.ne.s32.totalorder %s93, %s94
      %p105 = scmp.eq.s32.totalorder %s17, 0
      %p106 = por %p104, %p105
      %p107 = scmp.ne.s32.totalorder %s93, %s94
      %p108 = scmp.eq.s32.totalorder %s18, 3
      %p109 = por %p107, %p108
      %p111 = scmp.ne.s32.totalorder %s94, %s110
      %p112 = scmp.eq.s32.totalorder %s18, 0
      %p113 = por %p111, %p112
      %p114 = scmp.le.s32.totalorder 1, %s12
      %p115 = scmp.lt.s32.totalorder %s12, 5
      %p116 = pnand %p114, %p115
      %p117 = pneg %p116
      // Predicated region
      $region9: #{tpu_custom_call.1} parent=5 // pred_check
        _
      $region10: #{tpu_custom_call.1} parent=5 // pred_check_branch
        %119 = sbr.rel (%p116) target = $region12
      $region11: #{tpu_custom_call.1} parent=5 // pred_region
        %s120 = ssub.s32 %s12, 1
        // Predicated region
        $region13: #{tpu_custom_call.1} parent=11 // pred_check
          %p121 = pneg %p59
        $region14: #{tpu_custom_call.1} parent=11 // pred_check_branch
          %123 = sbr.rel (%p121) target = $region16
        $region15: #{tpu_custom_call.1} parent=11 // pred_region
          _
        $region16: #{tpu_custom_call.1} parent=11 // pred_fallthru
          _
        // Predicated region
        $region17: #{tpu_custom_call.1} parent=11 // pred_check
          %p124 = pneg %p80
        $region18: #{tpu_custom_call.1} parent=11 // pred_check_branch
          %126 = sbr.rel (%p124) target = $region20
        $region19: #{tpu_custom_call.1} parent=11 // pred_region
          _
        $region20: #{tpu_custom_call.1} parent=11 // pred_fallthru
          _
      $region12: #{tpu_custom_call.1} parent=5 // pred_fallthru
        _
      %p127 = scmp.lt.s32.totalorder %s12, 4
      // Predicated region
      $region21: #{tpu_custom_call.1} parent=5 // pred_check
        %p128 = pneg %p127
      $region22: #{tpu_custom_call.1} parent=5 // pred_check_branch
        %130 = sbr.rel (%p128) target = $region24
      $region23: #{tpu_custom_call.1} parent=5 // pred_region
        // Predicated region
        $region25: #{tpu_custom_call.1} parent=23 // pred_check
          %p131 = pneg %p32
        $region26: #{tpu_custom_call.1} parent=23 // pred_check_branch
          %133 = sbr.rel (%p131) target = $region28
        $region27: #{tpu_custom_call.1} parent=23 // pred_region
          %s134 = smul.u32 128, %s12
          %p135 = scmp.lt.s32.totalorder %s134, 511
          %s136 = scalar_select %p135, %s134, 511
          %s137 = smul.addr %s136, 8
          %s138 = scalar_lea.vmem %s0, %s137
          %s139 = smul.u32 128, %s12
        $region28: #{tpu_custom_call.1} parent=23 // pred_fallthru
          _
      $region24: #{tpu_custom_call.1} parent=5 // pred_fallthru
        _
      %p140 = scmp.le.s32.totalorder 1, %s12
      %p141 = scmp.lt.s32.totalorder %s12, 5
      %p142 = pnand %p140, %p141
      %p143 = pneg %p142
      // Predicated region
      $region29: #{tpu_custom_call.1} parent=5 // pred_check
        _
      $region30: #{tpu_custom_call.1} parent=5 // pred_check_branch
        %145 = sbr.rel (%p142) target = $region32
      $region31: #{tpu_custom_call.1} parent=5 // pred_region
        %s146 = ssub.s32 %s12, 1
        %s147 = smul.u32 128, %s17
        %p148 = scmp.lt.s32.totalorder %s147, 511
        %s149 = scalar_select %p148, %s147, 511
        %s150 = smul.addr %s149, 8
        %s151 = scalar_lea.vmem %s0, %s150
        %p152 = pneg %p38
        %p153 = pneg %p35
        %p154 = pneg %p59
        %p155 = pneg %p56
        %p156 = pneg %p80
        %p157 = pneg %p77
        %p158 = pneg %p106
        %p159 = pneg %p103
        %s160 = sand.u32 %s93, 1
        %s161 = scalar_lea.sflag [#allocation3], %s160
        %s162 = sand.u32 %s93, 1
        %s163 = smul.addr %s162, 1024
        %s164 = scalar_lea.vmem [#allocation2], %s163
        %s165 = smul.u32 128, %s17
        %p166 = scmp.lt.s32.totalorder %s165, 511
        %s167 = scalar_select %p166, %s165, 511
        %s168 = smul.addr %s167, 8
        %s169 = scalar_lea.vmem %s0, %s168
        %s170 = smul.u32 128, %s17
        %s171 = smul.u32 128, %s17
        %v172 = vld [vmem:[%s169] sm:$0xff]
        %v173 = vld [vmem:[%s169 + $0x8] sm:$0xff]
        %v174 = vld [vmem:[%s169 + $0x10] sm:$0xff]
        %v175 = vld [vmem:[%s169 + $0x18] sm:$0xff]
        %v176 = vld [vmem:[%s169 + $0x20] sm:$0xff]
        %v177 = vld [vmem:[%s169 + $0x28] sm:$0xff]
        %v178 = vld [vmem:[%s169 + $0x30] sm:$0xff]
        %v179 = vld [vmem:[%s169 + $0x38] sm:$0xff]
        %v180 = vld [vmem:[%s169 + $0x40] sm:$0xff]
        %v181 = vld [vmem:[%s169 + $0x48] sm:$0xff]
        %v182 = vld [vmem:[%s169 + $0x50] sm:$0xff]
        %v183 = vld [vmem:[%s169 + $0x58] sm:$0xff]
        %v184 = vld [vmem:[%s169 + $0x60] sm:$0xff]
        %v185 = vld [vmem:[%s169 + $0x68] sm:$0xff]
        %v186 = vld [vmem:[%s169 + $0x70] sm:$0xff]
        %v187 = vld [vmem:[%s169 + $0x78] sm:$0xff]
        %v188 = vld [vmem:[%s169 + $0x80] sm:$0xff]
        %v189 = vld [vmem:[%s169 + $0x88] sm:$0xff]
        %v190 = vld [vmem:[%s169 + $0x90] sm:$0xff]
        %v191 = vld [vmem:[%s169 + $0x98] sm:$0xff]
        %v192 = vld [vmem:[%s169 + $0xa0] sm:$0xff]
        %v193 = vld [vmem:[%s169 + $0xa8] sm:$0xff]
        %v194 = vld [vmem:[%s169 + $0xb0] sm:$0xff]
        %v195 = vld [vmem:[%s169 + $0xb8] sm:$0xff]
        %v196 = vld [vmem:[%s169 + $0xc0] sm:$0xff]
        %v197 = vld [vmem:[%s169 + $0xc8] sm:$0xff]
        %v198 = vld [vmem:[%s169 + $0xd0] sm:$0xff]
        %v199 = vld [vmem:[%s169 + $0xd8] sm:$0xff]
        %v200 = vld [vmem:[%s169 + $0xe0] sm:$0xff]
        %v201 = vld [vmem:[%s169 + $0xe8] sm:$0xff]
        %v202 = vld [vmem:[%s169 + $0xf0] sm:$0xff]
        %v203 = vld [vmem:[%s169 + $0xf8] sm:$0xff]
        %v204 = vld [vmem:[%s169 + $0x100] sm:$0xff]
        %v205 = vld [vmem:[%s169 + $0x108] sm:$0xff]
        %v206 = vld [vmem:[%s169 + $0x110] sm:$0xff]
        %v207 = vld [vmem:[%s169 + $0x118] sm:$0xff]
        %v208 = vld [vmem:[%s169 + $0x120] sm:$0xff]
        %v209 = vld [vmem:[%s169 + $0x128] sm:$0xff]
        %v210 = vld [vmem:[%s169 + $0x130] sm:$0xff]
        %v211 = vld [vmem:[%s169 + $0x138] sm:$0xff]
        %v212 = vld [vmem:[%s169 + $0x140] sm:$0xff]
        %v213 = vld [vmem:[%s169 + $0x148] sm:$0xff]
        %v214 = vld [vmem:[%s169 + $0x150] sm:$0xff]
        %v215 = vld [vmem:[%s169 + $0x158] sm:$0xff]
        %v216 = vld [vmem:[%s169 + $0x160] sm:$0xff]
        %v217 = vld [vmem:[%s169 + $0x168] sm:$0xff]
        %v218 = vld [vmem:[%s169 + $0x170] sm:$0xff]
        %v219 = vld [vmem:[%s169 + $0x178] sm:$0xff]
        %v220 = vld [vmem:[%s169 + $0x180] sm:$0xff]
        %v221 = vld [vmem:[%s169 + $0x188] sm:$0xff]
        %v222 = vld [vmem:[%s169 + $0x190] sm:$0xff]
        %v223 = vld [vmem:[%s169 + $0x198] sm:$0xff]
        %v224 = vld [vmem:[%s169 + $0x1a0] sm:$0xff]
        %v225 = vld [vmem:[%s169 + $0x1a8] sm:$0xff]
        %v226 = vld [vmem:[%s169 + $0x1b0] sm:$0xff]
        %v227 = vld [vmem:[%s169 + $0x1b8] sm:$0xff]
        %v228 = vld [vmem:[%s169 + $0x1c0] sm:$0xff]
        %v229 = vld [vmem:[%s169 + $0x1c8] sm:$0xff]
        %v230 = vld [vmem:[%s169 + $0x1d0] sm:$0xff]
        %v231 = vld [vmem:[%s169 + $0x1d8] sm:$0xff]
        %v232 = vld [vmem:[%s169 + $0x1e0] sm:$0xff]
        %v233 = vld [vmem:[%s169 + $0x1e8] sm:$0xff]
        %v234 = vld [vmem:[%s169 + $0x1f0] sm:$0xff]
        %v235 = vld [vmem:[%s169 + $0x1f8] sm:$0xff]
        %v236 = vld [vmem:[%s169 + $0x200] sm:$0xff]
        %v237 = vld [vmem:[%s169 + $0x208] sm:$0xff]
        %v238 = vld [vmem:[%s169 + $0x210] sm:$0xff]
        %v239 = vld [vmem:[%s169 + $0x218] sm:$0xff]
        %v240 = vld [vmem:[%s169 + $0x220] sm:$0xff]
        %v241 = vld [vmem:[%s169 + $0x228] sm:$0xff]
        %v242 = vld [vmem:[%s169 + $0x230] sm:$0xff]
        %v243 = vld [vmem:[%s169 + $0x238] sm:$0xff]
        %v244 = vld [vmem:[%s169 + $0x240] sm:$0xff]
        %v245 = vld [vmem:[%s169 + $0x248] sm:$0xff]
        %v246 = vld [vmem:[%s169 + $0x250] sm:$0xff]
        %v247 = vld [vmem:[%s169 + $0x258] sm:$0xff]
        %v248 = vld [vmem:[%s169 + $0x260] sm:$0xff]
        %v249 = vld [vmem:[%s169 + $0x268] sm:$0xff]
        %v250 = vld [vmem:[%s169 + $0x270] sm:$0xff]
        %v251 = vld [vmem:[%s169 + $0x278] sm:$0xff]
        %v252 = vld [vmem:[%s169 + $0x280] sm:$0xff]
        %v253 = vld [vmem:[%s169 + $0x288] sm:$0xff]
        %v254 = vld [vmem:[%s169 + $0x290] sm:$0xff]
        %v255 = vld [vmem:[%s169 + $0x298] sm:$0xff]
        %v256 = vld [vmem:[%s169 + $0x2a0] sm:$0xff]
        %v257 = vld [vmem:[%s169 + $0x2a8] sm:$0xff]
        %v258 = vld [vmem:[%s169 + $0x2b0] sm:$0xff]
        %v259 = vld [vmem:[%s169 + $0x2b8] sm:$0xff]
        %v260 = vld [vmem:[%s169 + $0x2c0] sm:$0xff]
        %v261 = vld [vmem:[%s169 + $0x2c8] sm:$0xff]
        %v262 = vld [vmem:[%s169 + $0x2d0] sm:$0xff]
        %v263 = vld [vmem:[%s169 + $0x2d8] sm:$0xff]
        %v264 = vld [vmem:[%s169 + $0x2e0] sm:$0xff]
        %v265 = vld [vmem:[%s169 + $0x2e8] sm:$0xff]
        %v266 = vld [vmem:[%s169 + $0x2f0] sm:$0xff]
        %v267 = vld [vmem:[%s169 + $0x2f8] sm:$0xff]
        %v268 = vld [vmem:[%s169 + $0x300] sm:$0xff]
        %v269 = vld [vmem:[%s169 + $0x308] sm:$0xff]
        %v270 = vld [vmem:[%s169 + $0x310] sm:$0xff]
        %v271 = vld [vmem:[%s169 + $0x318] sm:$0xff]
        %v272 = vld [vmem:[%s169 + $0x320] sm:$0xff]
        %v273 = vld [vmem:[%s169 + $0x328] sm:$0xff]
        %v274 = vld [vmem:[%s169 + $0x330] sm:$0xff]
        %v275 = vld [vmem:[%s169 + $0x338] sm:$0xff]
        %v276 = vld [vmem:[%s169 + $0x340] sm:$0xff]
        %v277 = vld [vmem:[%s169 + $0x348] sm:$0xff]
        %v278 = vld [vmem:[%s169 + $0x350] sm:$0xff]
        %v279 = vld [vmem:[%s169 + $0x358] sm:$0xff]
        %v280 = vld [vmem:[%s169 + $0x360] sm:$0xff]
        %v281 = vld [vmem:[%s169 + $0x368] sm:$0xff]
        %v282 = vld [vmem:[%s169 + $0x370] sm:$0xff]
        %v283 = vld [vmem:[%s169 + $0x378] sm:$0xff]
        %v284 = vld [vmem:[%s169 + $0x380] sm:$0xff]
        %v285 = vld [vmem:[%s169 + $0x388] sm:$0xff]
        %v286 = vld [vmem:[%s169 + $0x390] sm:$0xff]
        %v287 = vld [vmem:[%s169 + $0x398] sm:$0xff]
        %v288 = vld [vmem:[%s169 + $0x3a0] sm:$0xff]
        %v289 = vld [vmem:[%s169 + $0x3a8] sm:$0xff]
        %v290 = vld [vmem:[%s169 + $0x3b0] sm:$0xff]
        %v291 = vld [vmem:[%s169 + $0x3b8] sm:$0xff]
        %v292 = vld [vmem:[%s169 + $0x3c0] sm:$0xff]
        %v293 = vld [vmem:[%s169 + $0x3c8] sm:$0xff]
        %v294 = vld [vmem:[%s169 + $0x3d0] sm:$0xff]
        %v295 = vld [vmem:[%s169 + $0x3d8] sm:$0xff]
        %v296 = vld [vmem:[%s169 + $0x3e0] sm:$0xff]
        %v297 = vld [vmem:[%s169 + $0x3e8] sm:$0xff]
        %v298 = vld [vmem:[%s169 + $0x3f0] sm:$0xff]
        %v299 = vld [vmem:[%s169 + $0x3f8] sm:$0xff]
        %v300 = vld [vmem:[%s1] sm:$0xff]
        %v301 = vld [vmem:[%s1 + $0x8] sm:$0xff]
        %v302 = vld [vmem:[%s1 + $0x10] sm:$0xff]
        %v303 = vld [vmem:[%s1 + $0x18] sm:$0xff]
        %v304 = vld [vmem:[%s1 + $0x20] sm:$0xff]
        %v305 = vld [vmem:[%s1 + $0x28] sm:$0xff]
        %v306 = vld [vmem:[%s1 + $0x30] sm:$0xff]
        %v307 = vld [vmem:[%s1 + $0x38] sm:$0xff]
        %v308 = vld [vmem:[%s1 + $0x40] sm:$0xff]
        %v309 = vld [vmem:[%s1 + $0x48] sm:$0xff]
        %v310 = vld [vmem:[%s1 + $0x50] sm:$0xff]
        %v311 = vld [vmem:[%s1 + $0x58] sm:$0xff]
        %v312 = vld [vmem:[%s1 + $0x60] sm:$0x3]
        %v313 = vld [vmem:[%s2] sm:$0x1]
        %v315 = vlaneseq
        %v316 = vshrl.u32 %v315, 7
        %v317 = vsub.s32 0, %v316
        %v318 = vrot.slane %v313, %v317
        %vm320 = vcmask 801792
        %v322 = vsel %vm320, %v172, 0
        %v325 = vsel %vm320, %v173, 0
        %v328 = vsel %vm320, %v174, 0
        %v331 = vsel %vm320, %v175, 0
        %v334 = vsel %vm320, %v176, 0
        %v337 = vsel %vm320, %v177, 0
        %v340 = vsel %vm320, %v178, 0
        %v343 = vsel %vm320, %v179, 0
        %v346 = vsel %vm320, %v180, 0
        %v349 = vsel %vm320, %v181, 0
        %v352 = vsel %vm320, %v182, 0
        %v355 = vsel %vm320, %v183, 0
        %v358 = vsel %vm320, %v184, 0
        %v361 = vsel %vm320, %v185, 0
        %v364 = vsel %vm320, %v186, 0
        %v367 = vsel %vm320, %v187, 0
        %v370 = vsel %vm320, %v188, 0
        %v373 = vsel %vm320, %v189, 0
        %v376 = vsel %vm320, %v190, 0
        %v379 = vsel %vm320, %v191, 0
        %v382 = vsel %vm320, %v192, 0
        %v385 = vsel %vm320, %v193, 0
        %v388 = vsel %vm320, %v194, 0
        %v391 = vsel %vm320, %v195, 0
        %v394 = vsel %vm320, %v196, 0
        %v397 = vsel %vm320, %v197, 0
        %v400 = vsel %vm320, %v198, 0
        %v403 = vsel %vm320, %v199, 0
        %v406 = vsel %vm320, %v200, 0
        %v409 = vsel %vm320, %v201, 0
        %v412 = vsel %vm320, %v202, 0
        %v415 = vsel %vm320, %v203, 0
        %v418 = vsel %vm320, %v204, 0
        %v421 = vsel %vm320, %v205, 0
        %v424 = vsel %vm320, %v206, 0
        %v427 = vsel %vm320, %v207, 0
        %v430 = vsel %vm320, %v208, 0
        %v433 = vsel %vm320, %v209, 0
        %v436 = vsel %vm320, %v210, 0
        %v439 = vsel %vm320, %v211, 0
        %v442 = vsel %vm320, %v212, 0
        %v445 = vsel %vm320, %v213, 0
        %v448 = vsel %vm320, %v214, 0
        %v451 = vsel %vm320, %v215, 0
        %v454 = vsel %vm320, %v216, 0
        %v457 = vsel %vm320, %v217, 0
        %v460 = vsel %vm320, %v218, 0
        %v463 = vsel %vm320, %v219, 0
        %v466 = vsel %vm320, %v220, 0
        %v469 = vsel %vm320, %v221, 0
        %v472 = vsel %vm320, %v222, 0
        %v475 = vsel %vm320, %v223, 0
        %v478 = vsel %vm320, %v224, 0
        %v481 = vsel %vm320, %v225, 0
        %v484 = vsel %vm320, %v226, 0
        %v487 = vsel %vm320, %v227, 0
        %v490 = vsel %vm320, %v228, 0
        %v493 = vsel %vm320, %v229, 0
        %v496 = vsel %vm320, %v230, 0
        %v499 = vsel %vm320, %v231, 0
        %v502 = vsel %vm320, %v232, 0
        %v505 = vsel %vm320, %v233, 0
        %v508 = vsel %vm320, %v234, 0
        %v511 = vsel %vm320, %v235, 0
        %v514 = vsel %vm320, %v236, 0
        %v517 = vsel %vm320, %v237, 0
        %v520 = vsel %vm320, %v238, 0
        %v523 = vsel %vm320, %v239, 0
        %v526 = vsel %vm320, %v240, 0
        %v529 = vsel %vm320, %v241, 0
        %v532 = vsel %vm320, %v242, 0
        %v535 = vsel %vm320, %v243, 0
        %v538 = vsel %vm320, %v244, 0
        %v541 = vsel %vm320, %v245, 0
        %v544 = vsel %vm320, %v246, 0
        %v547 = vsel %vm320, %v247, 0
        %v550 = vsel %vm320, %v248, 0
        %v553 = vsel %vm320, %v249, 0
        %v556 = vsel %vm320, %v250, 0
        %v559 = vsel %vm320, %v251, 0
        %v562 = vsel %vm320, %v252, 0
        %v565 = vsel %vm320, %v253, 0
        %v568 = vsel %vm320, %v254, 0
        %v571 = vsel %vm320, %v255, 0
        %v574 = vsel %vm320, %v256, 0
        %v577 = vsel %vm320, %v257, 0
        %v580 = vsel %vm320, %v258, 0
        %v583 = vsel %vm320, %v259, 0
        %v586 = vsel %vm320, %v260, 0
        %v589 = vsel %vm320, %v261, 0
        %v592 = vsel %vm320, %v262, 0
        %v595 = vsel %vm320, %v263, 0
        %v598 = vsel %vm320, %v264, 0
        %v601 = vsel %vm320, %v265, 0
        %v604 = vsel %vm320, %v266, 0
        %v607 = vsel %vm320, %v267, 0
        %v610 = vsel %vm320, %v268, 0
        %v613 = vsel %vm320, %v269, 0
        %v616 = vsel %vm320, %v270, 0
        %v619 = vsel %vm320, %v271, 0
        %v622 = vsel %vm320, %v272, 0
        %v625 = vsel %vm320, %v273, 0
        %v628 = vsel %vm320, %v274, 0
        %v631 = vsel %vm320, %v275, 0
        %v634 = vsel %vm320, %v276, 0
        %v637 = vsel %vm320, %v277, 0
        %v640 = vsel %vm320, %v278, 0
        %v643 = vsel %vm320, %v279, 0
        %v646 = vsel %vm320, %v280, 0
        %v649 = vsel %vm320, %v281, 0
        %v652 = vsel %vm320, %v282, 0
        %v655 = vsel %vm320, %v283, 0
        %v658 = vsel %vm320, %v284, 0
        %v661 = vsel %vm320, %v285, 0
        %v664 = vsel %vm320, %v286, 0
        %v667 = vsel %vm320, %v287, 0
        %v670 = vsel %vm320, %v288, 0
        %v673 = vsel %vm320, %v289, 0
        %v676 = vsel %vm320, %v290, 0
        %v679 = vsel %vm320, %v291, 0
        %v682 = vsel %vm320, %v292, 0
        %v685 = vsel %vm320, %v293, 0
        %v688 = vsel %vm320, %v294, 0
        %v691 = vsel %vm320, %v295, 0
        %v694 = vsel %vm320, %v296, 0
        %v697 = vsel %vm320, %v297, 0
        %v700 = vsel %vm320, %v298, 0
        %v703 = vsel %vm320, %v299, 0
        %vm705 = vcmask 1041408
        %v707 = vsel %vm705, %v312, 0
        %709 = vmatprep.subr.mxu0 0.0
        %710 = vmatpush1.msra.mxu0 %v300
        %711 = vmatprep.subr.mxu0 0.0
        %712 = vmatpush1.msra.mxu0 %v301
        %713 = vmatprep.subr.mxu0 0.0
        %714 = vmatpush1.msra.mxu0 %v302
        %715 = vmatprep.subr.mxu0 0.0
        %716 = vmatpush1.msra.mxu0 %v303
        %717 = vmatprep.subr.mxu0 0.0
        %718 = vmatpush1.msra.mxu0 %v304
        %719 = vmatprep.subr.mxu0 0.0
        %720 = vmatpush1.msra.mxu0 %v305
        %721 = vmatprep.subr.mxu0 0.0
        %722 = vmatpush1.msra.mxu0 %v306
        %723 = vmatprep.subr.mxu0 0.0
        %724 = vmatpush1.msra.mxu0 %v307
        %725 = vmatprep.subr.mxu0 0.0
        %726 = vmatpush1.msra.mxu0 %v308
        %727 = vmatprep.subr.mxu0 0.0
        %728 = vmatpush1.msra.mxu0 %v309
        %729 = vmatprep.subr.mxu0 0.0
        %730 = vmatpush1.msra.mxu0 %v310
        %731 = vmatprep.subr.mxu0 0.0
        %732 = vmatpush1.msra.mxu0 %v311
        %733 = vmatprep.subr.mxu0 0.0
        %734 = vmatpush1.msra.mxu0 %v707
        %735 = vmatprep.subr.mxu0 0.0
        %736 = vmatpush1.msra.mxu0 0.0
        %737 = vmatprep.subr.mxu0 0.0
        %738 = vmatpush1.msra.mxu0 0.0
        %739 = vmatprep.subr.mxu0 0.0
        %740 = vmatpush1.msra.mxu0 0.0
        %741 = vmatprep.subr.mxu0 0.0
        %742 = vmatpush1.msra.mxu0 0.0
        %743 = vmatprep.subr.mxu0 0.0
        %744 = vmatpush1.msra.mxu0 0.0
        %745 = vmatprep.subr.mxu0 0.0
        %746 = vmatpush1.msra.mxu0 0.0
        %747 = vmatprep.subr.mxu0 0.0
        %748 = vmatpush1.msra.mxu0 0.0
        %749 = vmatprep.subr.mxu0 0.0
        %750 = vmatpush1.msra.mxu0 0.0
        %751 = vmatprep.subr.mxu0 0.0
        %752 = vmatpush1.msra.mxu0 0.0
        %753 = vmatprep.subr.mxu0 0.0
        %754 = vmatpush1.msra.mxu0 0.0
        %755 = vmatprep.subr.mxu0 0.0
        %756 = vmatpush1.msra.mxu0 0.0
        %757 = vmatprep.subr.mxu0 0.0
        %758 = vmatpush1.msra.mxu0 0.0
        %759 = vmatprep.subr.mxu0 0.0
        %760 = vmatpush1.msra.mxu0 0.0
        %761 = vmatprep.subr.mxu0 0.0
        %762 = vmatpush1.msra.mxu0 0.0
        %763 = vmatprep.subr.mxu0 0.0
        %764 = vmatpush1.msra.mxu0 0.0
        %765 = vmatprep.subr.mxu0 0.0
        %766 = vmatpush1.msra.mxu0 0.0
        %767 = vmatprep.subr.mxu0 0.0
        %768 = vmatpush1.msra.mxu0 0.0
        %769 = vmatprep.subr.mxu0 0.0
        %770 = vmatpush1.msra.mxu0 0.0
        %771 = vmatprep.subr.mxu0 0.0
        %772 = vmatpush1.msra.mxu0 0.0
        %773 = vmatprep.mubr.f32.mxu0 0.0
        %774 = vmatmul.mubr.f32.gmra.mrb[0].mxu0 %v322
        %v775 = vpop.f32.mrb[0].mxu0
        %v776 = vadd.f32 %v318, %v775
        %v777 = vpop.f32.mrb[0].mxu0
        %778 = vmatprep.mubr.f32.mxu0 0.0
        %779 = vmatmul.mubr.f32.gmra.mrb[0].mxu0 %v325
        %v780 = vpop.f32.mrb[0].mxu0
        %v781 = vadd.f32 %v318, %v780
        %v782 = vpop.f32.mrb[0].mxu0
        %783 = vmatprep.mubr.f32.mxu0 0.0
        %784 = vmatmul.mubr.f32.gmra.mrb[0].mxu0 %v328
        %v785 = vpop.f32.mrb[0].mxu0
        %v786 = vadd.f32 %v318, %v785
        %v787 = vpop.f32.mrb[0].mxu0
        %788 = vmatprep.mubr.f32.mxu0 0.0
        %789 = vmatmul.mubr.f32.gmra.mrb[0].mxu0 %v331
        %v790 = vpop.f32.mrb[0].mxu0
        %v791 = vadd.f32 %v318, %v790
        %v792 = vpop.f32.mrb[0].mxu0
        %793 = vmatprep.mubr.f32.mxu0 0.0
        %794 = vmatmul.mubr.f32.gmra.mrb[0].mxu0 %v334
        %v795 = vpop.f32.mrb[0].mxu0
        %v796 = vadd.f32 %v318, %v795
        %v797 = vpop.f32.mrb[0].mxu0
        %798 = vmatprep.mubr.f32.mxu0 0.0
        %799 = vmatmul.mubr.f32.gmra.mrb[0].mxu0 %v337
        %v800 = vpop.f32.mrb[0].mxu0
        %v801 = vadd.f32 %v318, %v800
        %v802 = vpop.f32.mrb[0].mxu0
        %803 = vmatprep.mubr.f32.mxu0 0.0
        %804 = vmatmul.mubr.f32.gmra.mrb[0].mxu0 %v340
        %v805 = vpop.f32.mrb[0].mxu0
        %v806 = vadd.f32 %v318, %v805
        %v807 = vpop.f32.mrb[0].mxu0
        %808 = vmatprep.mubr.f32.mxu0 0.0
        %809 = vmatmul.mubr.f32.gmra.mrb[0].mxu0 %v343
        %v810 = vpop.f32.mrb[0].mxu0
        %v811 = vadd.f32 %v318, %v810
        %v812 = vpop.f32.mrb[0].mxu0
        %813 = vmatprep.mubr.f32.mxu0 0.0
        %814 = vmatmul.mubr.f32.gmra.mrb[0].mxu0 %v346
        %v815 = vpop.f32.mrb[0].mxu0
        %v816 = vadd.f32 %v318, %v815
        %v817 = vpop.f32.mrb[0].mxu0
        %818 = vmatprep.mubr.f32.mxu0 0.0
        %819 = vmatmul.mubr.f32.gmra.mrb[0].mxu0 %v349
        %v820 = vpop.f32.mrb[0].mxu0
        %v821 = vadd.f32 %v318, %v820
        %v822 = vpop.f32.mrb[0].mxu0
        %823 = vmatprep.mubr.f32.mxu0 0.0
        %824 = vmatmul.mubr.f32.gmra.mrb[0].mxu0 %v352
        %v825 = vpop.f32.mrb[0].mxu0
        %v826 = vadd.f32 %v318, %v825
        %v827 = vpop.f32.mrb[0].mxu0
        %828 = vmatprep.mubr.f32.mxu0 0.0
        %829 = vmatmul.mubr.f32.gmra.mrb[0].mxu0 %v355
        %v830 = vpop.f32.mrb[0].mxu0
        %v831 = vadd.f32 %v318, %v830
        %v832 = vpop.f32.mrb[0].mxu0
        %833 = vmatprep.mubr.f32.mxu0 0.0
        %834 = vmatmul.mubr.f32.gmra.mrb[0].mxu0 %v358
        %v835 = vpop.f32.mrb[0].mxu0
        %v836 = vadd.f32 %v318, %v835
        %v837 = vpop.f32.mrb[0].mxu0
        %838 = vmatprep.mubr.f32.mxu0 0.0
        %839 = vmatmul.mubr.f32.gmra.mrb[0].mxu0 %v361
        %v840 = vpop.f32.mrb[0].mxu0
        %v841 = vadd.f32 %v318, %v840
        %v842 = vpop.f32.mrb[0].mxu0
        %843 = vmatprep.mubr.f32.mxu0 0.0
        %844 = vmatmul.mubr.f32.gmra.mrb[0].mxu0 %v364
        %v845 = vpop.f32.mrb[0].mxu0
        %v846 = vadd.f32 %v318, %v845
        %v847 = vpop.f32.mrb[0].mxu0
        %848 = vmatprep.mubr.f32.mxu0 0.0
        %849 = vmatmul.mubr.f32.gmra.mrb[0].mxu0 %v367
        %v850 = vpop.f32.mrb[0].mxu0
        %v851 = vadd.f32 %v318, %v850
        %v852 = vpop.f32.mrb[0].mxu0
        %853 = vmatprep.mubr.f32.mxu0 0.0
        %854 = vmatmul.mubr.f32.gmra.mrb[0].mxu0 %v370
        %v855 = vpop.f32.mrb[0].mxu0
        %v856 = vadd.f32 %v318, %v855
        %v857 = vpop.f32.mrb[0].mxu0
        %858 = vmatprep.mubr.f32.mxu0 0.0
        %859 = vmatmul.mubr.f32.gmra.mrb[0].mxu0 %v373
        %v860 = vpop.f32.mrb[0].mxu0
        %v861 = vadd.f32 %v318, %v860
        %v862 = vpop.f32.mrb[0].mxu0
        %863 = vmatprep.mubr.f32.mxu0 0.0
        %864 = vmatmul.mubr.f32.gmra.mrb[0].mxu0 %v376
        %v865 = vpop.f32.mrb[0].mxu0
        %v866 = vadd.f32 %v318, %v865
        %v867 = vpop.f32.mrb[0].mxu0
        %868 = vmatprep.mubr.f32.mxu0 0.0
        %869 = vmatmul.mubr.f32.gmra.mrb[0].mxu0 %v379
        %v870 = vpop.f32.mrb[0].mxu0
        %v871 = vadd.f32 %v318, %v870
        %v872 = vpop.f32.mrb[0].mxu0
        %873 = vmatprep.mubr.f32.mxu0 0.0
        %874 = vmatmul.mubr.f32.gmra.mrb[0].mxu0 %v382
        %v875 = vpop.f32.mrb[0].mxu0
        %v876 = vadd.f32 %v318, %v875
        %v877 = vpop.f32.mrb[0].mxu0
        %878 = vmatprep.mubr.f32.mxu0 0.0
        %879 = vmatmul.mubr.f32.gmra.mrb[0].mxu0 %v385
        %v880 = vpop.f32.mrb[0].mxu0
        %v881 = vadd.f32 %v318, %v880
        %v882 = vpop.f32.mrb[0].mxu0
        %883 = vmatprep.mubr.f32.mxu0 0.0
        %884 = vmatmul.mubr.f32.gmra.mrb[0].mxu0 %v388
        %v885 = vpop.f32.mrb[0].mxu0
        %v886 = vadd.f32 %v318, %v885
        %v887 = vpop.f32.mrb[0].mxu0
        %888 = vmatprep.mubr.f32.mxu0 0.0
        %889 = vmatmul.mubr.f32.gmra.mrb[0].mxu0 %v391
        %v890 = vpop.f32.mrb[0].mxu0
        %v891 = vadd.f32 %v318, %v890
        %v892 = vpop.f32.mrb[0].mxu0
        %893 = vmatprep.mubr.f32.mxu0 0.0
        %894 = vmatmul.mubr.f32.gmra.mrb[0].mxu0 %v394
        %v895 = vpop.f32.mrb[0].mxu0
        %v896 = vadd.f32 %v318, %v895
        %v897 = vpop.f32.mrb[0].mxu0
        %898 = vmatprep.mubr.f32.mxu0 0.0
        %899 = vmatmul.mubr.f32.gmra.mrb[0].mxu0 %v397
        %v900 = vpop.f32.mrb[0].mxu0
        %v901 = vadd.f32 %v318, %v900
        %v902 = vpop.f32.mrb[0].mxu0
        %903 = vmatprep.mubr.f32.mxu0 0.0
        %904 = vmatmul.mubr.f32.gmra.mrb[0].mxu0 %v400
        %v905 = vpop.f32.mrb[0].mxu0
        %v906 = vadd.f32 %v318, %v905
        %v907 = vpop.f32.mrb[0].mxu0
        %908 = vmatprep.mubr.f32.mxu0 0.0
        %909 = vmatmul.mubr.f32.gmra.mrb[0].mxu0 %v403
        %v910 = vpop.f32.mrb[0].mxu0
        %v911 = vadd.f32 %v318, %v910
        %v912 = vpop.f32.mrb[0].mxu0
        %913 = vmatprep.mubr.f32.mxu0 0.0
        %914 = vmatmul.mubr.f32.gmra.mrb[0].mxu0 %v406
        %v915 = vpop.f32.mrb[0].mxu0
        %v916 = vadd.f32 %v318, %v915
        %v917 = vpop.f32.mrb[0].mxu0
        %918 = vmatprep.mubr.f32.mxu0 0.0
        %919 = vmatmul.mubr.f32.gmra.mrb[0].mxu0 %v409
        %v920 = vpop.f32.mrb[0].mxu0
        %v921 = vadd.f32 %v318, %v920
        %v922 = vpop.f32.mrb[0].mxu0
        %923 = vmatprep.mubr.f32.mxu0 0.0
        %924 = vmatmul.mubr.f32.gmra.mrb[0].mxu0 %v412
        %v925 = vpop.f32.mrb[0].mxu0
        %v926 = vadd.f32 %v318, %v925
        %v927 = vpop.f32.mrb[0].mxu0
        %928 = vmatprep.mubr.f32.mxu0 0.0
        %929 = vmatmul.mubr.f32.gmra.mrb[0].mxu0 %v415
        %v930 = vpop.f32.mrb[0].mxu0
        %v931 = vadd.f32 %v318, %v930
        %v932 = vpop.f32.mrb[0].mxu0
        %933 = vmatprep.mubr.f32.mxu0 0.0
        %934 = vmatmul.mubr.f32.gmra.mrb[0].mxu0 %v418
        %v935 = vpop.f32.mrb[0].mxu0
        %v936 = vadd.f32 %v318, %v935
        %v937 = vpop.f32.mrb[0].mxu0
        %938 = vmatprep.mubr.f32.mxu0 0.0
        %939 = vmatmul.mubr.f32.gmra.mrb[0].mxu0 %v421
        %v940 = vpop.f32.mrb[0].mxu0
        %v941 = vadd.f32 %v318, %v940
        %v942 = vpop.f32.mrb[0].mxu0
        %943 = vmatprep.mubr.f32.mxu0 0.0
        %944 = vmatmul.mubr.f32.gmra.mrb[0].mxu0 %v424
        %v945 = vpop.f32.mrb[0].mxu0
        %v946 = vadd.f32 %v318, %v945
        %v947 = vpop.f32.mrb[0].mxu0
        %948 = vmatprep.mubr.f32.mxu0 0.0
        %949 = vmatmul.mubr.f32.gmra.mrb[0].mxu0 %v427
        %v950 = vpop.f32.mrb[0].mxu0
        %v951 = vadd.f32 %v318, %v950
        %v952 = vpop.f32.mrb[0].mxu0
        %953 = vmatprep.mubr.f32.mxu0 0.0
        %954 = vmatmul.mubr.f32.gmra.mrb[0].mxu0 %v430
        %v955 = vpop.f32.mrb[0].mxu0
        %v956 = vadd.f32 %v318, %v955
        %v957 = vpop.f32.mrb[0].mxu0
        %958 = vmatprep.mubr.f32.mxu0 0.0
        %959 = vmatmul.mubr.f32.gmra.mrb[0].mxu0 %v433
        %v960 = vpop.f32.mrb[0].mxu0
        %v961 = vadd.f32 %v318, %v960
        %v962 = vpop.f32.mrb[0].mxu0
        %963 = vmatprep.mubr.f32.mxu0 0.0
        %964 = vmatmul.mubr.f32.gmra.mrb[0].mxu0 %v436
        %v965 = vpop.f32.mrb[0].mxu0
        %v966 = vadd.f32 %v318, %v965
        %v967 = vpop.f32.mrb[0].mxu0
        %968 = vmatprep.mubr.f32.mxu0 0.0
        %969 = vmatmul.mubr.f32.gmra.mrb[0].mxu0 %v439
        %v970 = vpop.f32.mrb[0].mxu0
        %v971 = vadd.f32 %v318, %v970
        %v972 = vpop.f32.mrb[0].mxu0
        %973 = vmatprep.mubr.f32.mxu0 0.0
        %974 = vmatmul.mubr.f32.gmra.mrb[0].mxu0 %v442
        %v975 = vpop.f32.mrb[0].mxu0
        %v976 = vadd.f32 %v318, %v975
        %v977 = vpop.f32.mrb[0].mxu0
        %978 = vmatprep.mubr.f32.mxu0 0.0
        %979 = vmatmul.mubr.f32.gmra.mrb[0].mxu0 %v445
        %v980 = vpop.f32.mrb[0].mxu0
        %v981 = vadd.f32 %v318, %v980
        %v982 = vpop.f32.mrb[0].mxu0
        %983 = vmatprep.mubr.f32.mxu0 0.0
        %984 = vmatmul.mubr.f32.gmra.mrb[0].mxu0 %v448
        %v985 = vpop.f32.mrb[0].mxu0
        %v986 = vadd.f32 %v318, %v985
        %v987 = vpop.f32.mrb[0].mxu0
        %988 = vmatprep.mubr.f32.mxu0 0.0
        %989 = vmatmul.mubr.f32.gmra.mrb[0].mxu0 %v451
        %v990 = vpop.f32.mrb[0].mxu0
        %v991 = vadd.f32 %v318, %v990
        %v992 = vpop.f32.mrb[0].mxu0
        %993 = vmatprep.mubr.f32.mxu0 0.0
        %994 = vmatmul.mubr.f32.gmra.mrb[0].mxu0 %v454
        %v995 = vpop.f32.mrb[0].mxu0
        %v996 = vadd.f32 %v318, %v995
        %v997 = vpop.f32.mrb[0].mxu0
        %998 = vmatprep.mubr.f32.mxu0 0.0
        %999 = vmatmul.mubr.f32.gmra.mrb[0].mxu0 %v457
        %v1000 = vpop.f32.mrb[0].mxu0
        %v1001 = vadd.f32 %v318, %v1000
        %v1002 = vpop.f32.mrb[0].mxu0
        %1003 = vmatprep.mubr.f32.mxu0 0.0
        %1004 = vmatmul.mubr.f32.gmra.mrb[0].mxu0 %v460
        %v1005 = vpop.f32.mrb[0].mxu0
        %v1006 = vadd.f32 %v318, %v1005
        %v1007 = vpop.f32.mrb[0].mxu0
        %1008 = vmatprep.mubr.f32.mxu0 0.0
        %1009 = vmatmul.mubr.f32.gmra.mrb[0].mxu0 %v463
        %v1010 = vpop.f32.mrb[0].mxu0
        %v1011 = vadd.f32 %v318, %v1010
        %v1012 = vpop.f32.mrb[0].mxu0
        %1013 = vmatprep.mubr.f32.mxu0 0.0
        %1014 = vmatmul.mubr.f32.gmra.mrb[0].mxu0 %v466
        %v1015 = vpop.f32.mrb[0].mxu0
        %v1016 = vadd.f32 %v318, %v1015
        %v1017 = vpop.f32.mrb[0].mxu0
        %1018 = vmatprep.mubr.f32.mxu0 0.0
        %1019 = vmatmul.mubr.f32.gmra.mrb[0].mxu0 %v469
        %v1020 = vpop.f32.mrb[0].mxu0
        %v1021 = vadd.f32 %v318, %v1020
        %v1022 = vpop.f32.mrb[0].mxu0
        %1023 = vmatprep.mubr.f32.mxu0 0.0
        %1024 = vmatmul.mubr.f32.gmra.mrb[0].mxu0 %v472
        %v1025 = vpop.f32.mrb[0].mxu0
        %v1026 = vadd.f32 %v318, %v1025
        %v1027 = vpop.f32.mrb[0].mxu0
        %1028 = vmatprep.mubr.f32.mxu0 0.0
        %1029 = vmatmul.mubr.f32.gmra.mrb[0].mxu0 %v475
        %v1030 = vpop.f32.mrb[0].mxu0
        %v1031 = vadd.f32 %v318, %v1030
        %v1032 = vpop.f32.mrb[0].mxu0
        %1033 = vmatprep.mubr.f32.mxu0 0.0
        %1034 = vmatmul.mubr.f32.gmra.mrb[0].mxu0 %v478
        %v1035 = vpop.f32.mrb[0].mxu0
        %v1036 = vadd.f32 %v318, %v1035
        %v1037 = vpop.f32.mrb[0].mxu0
        %1038 = vmatprep.mubr.f32.mxu0 0.0
        %1039 = vmatmul.mubr.f32.gmra.mrb[0].mxu0 %v481
        %v1040 = vpop.f32.mrb[0].mxu0
        %v1041 = vadd.f32 %v318, %v1040
        %v1042 = vpop.f32.mrb[0].mxu0
        %1043 = vmatprep.mubr.f32.mxu0 0.0
        %1044 = vmatmul.mubr.f32.gmra.mrb[0].mxu0 %v484
        %v1045 = vpop.f32.mrb[0].mxu0
        %v1046 = vadd.f32 %v318, %v1045
        %v1047 = vpop.f32.mrb[0].mxu0
        %1048 = vmatprep.mubr.f32.mxu0 0.0
        %1049 = vmatmul.mubr.f32.gmra.mrb[0].mxu0 %v487
        %v1050 = vpop.f32.mrb[0].mxu0
        %v1051 = vadd.f32 %v318, %v1050
        %v1052 = vpop.f32.mrb[0].mxu0
        %1053 = vmatprep.mubr.f32.mxu0 0.0
        %1054 = vmatmul.mubr.f32.gmra.mrb[0].mxu0 %v490
        %v1055 = vpop.f32.mrb[0].mxu0
        %v1056 = vadd.f32 %v318, %v1055
        %v1057 = vpop.f32.mrb[0].mxu0
        %1058 = vmatprep.mubr.f32.mxu0 0.0
        %1059 = vmatmul.mubr.f32.gmra.mrb[0].mxu0 %v493
        %v1060 = vpop.f32.mrb[0].mxu0
        %v1061 = vadd.f32 %v318, %v1060
        %v1062 = vpop.f32.mrb[0].mxu0
        %1063 = vmatprep.mubr.f32.mxu0 0.0
        %1064 = vmatmul.mubr.f32.gmra.mrb[0].mxu0 %v496
        %v1065 = vpop.f32.mrb[0].mxu0
        %v1066 = vadd.f32 %v318, %v1065
        %v1067 = vpop.f32.mrb[0].mxu0
        %1068 = vmatprep.mubr.f32.mxu0 0.0
        %1069 = vmatmul.mubr.f32.gmra.mrb[0].mxu0 %v499
        %v1070 = vpop.f32.mrb[0].mxu0
        %v1071 = vadd.f32 %v318, %v1070
        %v1072 = vpop.f32.mrb[0].mxu0
        %1073 = vmatprep.mubr.f32.mxu0 0.0
        %1074 = vmatmul.mubr.f32.gmra.mrb[0].mxu0 %v502
        %v1075 = vpop.f32.mrb[0].mxu0
        %v1076 = vadd.f32 %v318, %v1075
        %v1077 = vpop.f32.mrb[0].mxu0
        %1078 = vmatprep.mubr.f32.mxu0 0.0
        %1079 = vmatmul.mubr.f32.gmra.mrb[0].mxu0 %v505
        %v1080 = vpop.f32.mrb[0].mxu0
        %v1081 = vadd.f32 %v318, %v1080
        %v1082 = vpop.f32.mrb[0].mxu0
        %1083 = vmatprep.mubr.f32.mxu0 0.0
        %1084 = vmatmul.mubr.f32.gmra.mrb[0].mxu0 %v508
        %v1085 = vpop.f32.mrb[0].mxu0
        %v1086 = vadd.f32 %v318, %v1085
        %v1087 = vpop.f32.mrb[0].mxu0
        %1088 = vmatprep.mubr.f32.mxu0 0.0
        %1089 = vmatmul.mubr.f32.gmra.mrb[0].mxu0 %v511
        %v1090 = vpop.f32.mrb[0].mxu0
        %v1091 = vadd.f32 %v318, %v1090
        %v1092 = vpop.f32.mrb[0].mxu0
        %1093 = vmatprep.mubr.f32.mxu0 0.0
        %1094 = vmatmul.mubr.f32.gmra.mrb[0].mxu0 %v514
        %v1095 = vpop.f32.mrb[0].mxu0
        %v1096 = vadd.f32 %v318, %v1095
        %v1097 = vpop.f32.mrb[0].mxu0
        %1098 = vmatprep.mubr.f32.mxu0 0.0
        %1099 = vmatmul.mubr.f32.gmra.mrb[0].mxu0 %v517
        %v1100 = vpop.f32.mrb[0].mxu0
        %v1101 = vadd.f32 %v318, %v1100
        %v1102 = vpop.f32.mrb[0].mxu0
        %1103 = vmatprep.mubr.f32.mxu0 0.0
        %1104 = vmatmul.mubr.f32.gmra.mrb[0].mxu0 %v520
        %v1105 = vpop.f32.mrb[0].mxu0
        %v1106 = vadd.f32 %v318, %v1105
        %v1107 = vpop.f32.mrb[0].mxu0
        %1108 = vmatprep.mubr.f32.mxu0 0.0
        %1109 = vmatmul.mubr.f32.gmra.mrb[0].mxu0 %v523
        %v1110 = vpop.f32.mrb[0].mxu0
        %v1111 = vadd.f32 %v318, %v1110
        %v1112 = vpop.f32.mrb[0].mxu0
        %1113 = vmatprep.mubr.f32.mxu0 0.0
        %1114 = vmatmul.mubr.f32.gmra.mrb[0].mxu0 %v526
        %v1115 = vpop.f32.mrb[0].mxu0
        %v1116 = vadd.f32 %v318, %v1115
        %v1117 = vpop.f32.mrb[0].mxu0
        %1118 = vmatprep.mubr.f32.mxu0 0.0
        %1119 = vmatmul.mubr.f32.gmra.mrb[0].mxu0 %v529
        %v1120 = vpop.f32.mrb[0].mxu0
        %v1121 = vadd.f32 %v318, %v1120
        %v1122 = vpop.f32.mrb[0].mxu0
        %1123 = vmatprep.mubr.f32.mxu0 0.0
        %1124 = vmatmul.mubr.f32.gmra.mrb[0].mxu0 %v532
        %v1125 = vpop.f32.mrb[0].mxu0
        %v1126 = vadd.f32 %v318, %v1125
        %v1127 = vpop.f32.mrb[0].mxu0
        %1128 = vmatprep.mubr.f32.mxu0 0.0
        %1129 = vmatmul.mubr.f32.gmra.mrb[0].mxu0 %v535
        %v1130 = vpop.f32.mrb[0].mxu0
        %v1131 = vadd.f32 %v318, %v1130
        %v1132 = vpop.f32.mrb[0].mxu0
        %1133 = vmatprep.mubr.f32.mxu0 0.0
        %1134 = vmatmul.mubr.f32.gmra.mrb[0].mxu0 %v538
        %v1135 = vpop.f32.mrb[0].mxu0
        %v1136 = vadd.f32 %v318, %v1135
        %v1137 = vpop.f32.mrb[0].mxu0
        %1138 = vmatprep.mubr.f32.mxu0 0.0
        %1139 = vmatmul.mubr.f32.gmra.mrb[0].mxu0 %v541
        %v1140 = vpop.f32.mrb[0].mxu0
        %v1141 = vadd.f32 %v318, %v1140
        %v1142 = vpop.f32.mrb[0].mxu0
        %1143 = vmatprep.mubr.f32.mxu0 0.0
        %1144 = vmatmul.mubr.f32.gmra.mrb[0].mxu0 %v544
        %v1145 = vpop.f32.mrb[0].mxu0
        %v1146 = vadd.f32 %v318, %v1145
        %v1147 = vpop.f32.mrb[0].mxu0
        %1148 = vmatprep.mubr.f32.mxu0 0.0
        %1149 = vmatmul.mubr.f32.gmra.mrb[0].mxu0 %v547
        %v1150 = vpop.f32.mrb[0].mxu0
        %v1151 = vadd.f32 %v318, %v1150
        %v1152 = vpop.f32.mrb[0].mxu0
        %1153 = vmatprep.mubr.f32.mxu0 0.0
        %1154 = vmatmul.mubr.f32.gmra.mrb[0].mxu0 %v550
        %v1155 = vpop.f32.mrb[0].mxu0
        %v1156 = vadd.f32 %v318, %v1155
        %v1157 = vpop.f32.mrb[0].mxu0
        %1158 = vmatprep.mubr.f32.mxu0 0.0
        %1159 = vmatmul.mubr.f32.gmra.mrb[0].mxu0 %v553
        %v1160 = vpop.f32.mrb[0].mxu0
        %v1161 = vadd.f32 %v318, %v1160
        %v1162 = vpop.f32.mrb[0].mxu0
        %1163 = vmatprep.mubr.f32.mxu0 0.0
        %1164 = vmatmul.mubr.f32.gmra.mrb[0].mxu0 %v556
        %v1165 = vpop.f32.mrb[0].mxu0
        %v1166 = vadd.f32 %v318, %v1165
        %v1167 = vpop.f32.mrb[0].mxu0
        %1168 = vmatprep.mubr.f32.mxu0 0.0
        %1169 = vmatmul.mubr.f32.gmra.mrb[0].mxu0 %v559
        %v1170 = vpop.f32.mrb[0].mxu0
        %v1171 = vadd.f32 %v318, %v1170
        %v1172 = vpop.f32.mrb[0].mxu0
        %1173 = vmatprep.mubr.f32.mxu0 0.0
        %1174 = vmatmul.mubr.f32.gmra.mrb[0].mxu0 %v562
        %v1175 = vpop.f32.mrb[0].mxu0
        %v1176 = vadd.f32 %v318, %v1175
        %v1177 = vpop.f32.mrb[0].mxu0
        %1178 = vmatprep.mubr.f32.mxu0 0.0
        %1179 = vmatmul.mubr.f32.gmra.mrb[0].mxu0 %v565
        %v1180 = vpop.f32.mrb[0].mxu0
        %v1181 = vadd.f32 %v318, %v1180
        %v1182 = vpop.f32.mrb[0].mxu0
        %1183 = vmatprep.mubr.f32.mxu0 0.0
        %1184 = vmatmul.mubr.f32.gmra.mrb[0].mxu0 %v568
        %v1185 = vpop.f32.mrb[0].mxu0
        %v1186 = vadd.f32 %v318, %v1185
        %v1187 = vpop.f32.mrb[0].mxu0
        %1188 = vmatprep.mubr.f32.mxu0 0.0
        %1189 = vmatmul.mubr.f32.gmra.mrb[0].mxu0 %v571
        %v1190 = vpop.f32.mrb[0].mxu0
        %v1191 = vadd.f32 %v318, %v1190
        %v1192 = vpop.f32.mrb[0].mxu0
        %1193 = vmatprep.mubr.f32.mxu0 0.0
        %1194 = vmatmul.mubr.f32.gmra.mrb[0].mxu0 %v574
        %v1195 = vpop.f32.mrb[0].mxu0
        %v1196 = vadd.f32 %v318, %v1195
        %v1197 = vpop.f32.mrb[0].mxu0
        %1198 = vmatprep.mubr.f32.mxu0 0.0
        %1199 = vmatmul.mubr.f32.gmra.mrb[0].mxu0 %v577
        %v1200 = vpop.f32.mrb[0].mxu0
        %v1201 = vadd.f32 %v318, %v1200
        %v1202 = vpop.f32.mrb[0].mxu0
        %1203 = vmatprep.mubr.f32.mxu0 0.0
        %1204 = vmatmul.mubr.f32.gmra.mrb[0].mxu0 %v580
        %v1205 = vpop.f32.mrb[0].mxu0
        %v1206 = vadd.f32 %v318, %v1205
        %v1207 = vpop.f32.mrb[0].mxu0
        %1208 = vmatprep.mubr.f32.mxu0 0.0
        %1209 = vmatmul.mubr.f32.gmra.mrb[0].mxu0 %v583
        %v1210 = vpop.f32.mrb[0].mxu0
        %v1211 = vadd.f32 %v318, %v1210
        %v1212 = vpop.f32.mrb[0].mxu0
        %1213 = vmatprep.mubr.f32.mxu0 0.0
        %1214 = vmatmul.mubr.f32.gmra.mrb[0].mxu0 %v586
        %v1215 = vpop.f32.mrb[0].mxu0
        %v1216 = vadd.f32 %v318, %v1215
        %v1217 = vpop.f32.mrb[0].mxu0
        %1218 = vmatprep.mubr.f32.mxu0 0.0
        %1219 = vmatmul.mubr.f32.gmra.mrb[0].mxu0 %v589
        %v1220 = vpop.f32.mrb[0].mxu0
        %v1221 = vadd.f32 %v318, %v1220
        %v1222 = vpop.f32.mrb[0].mxu0
        %1223 = vmatprep.mubr.f32.mxu0 0.0
        %1224 = vmatmul.mubr.f32.gmra.mrb[0].mxu0 %v592
        %v1225 = vpop.f32.mrb[0].mxu0
        %v1226 = vadd.f32 %v318, %v1225
        %v1227 = vpop.f32.mrb[0].mxu0
        %1228 = vmatprep.mubr.f32.mxu0 0.0
        %1229 = vmatmul.mubr.f32.gmra.mrb[0].mxu0 %v595
        %v1230 = vpop.f32.mrb[0].mxu0
        %v1231 = vadd.f32 %v318, %v1230
        %v1232 = vpop.f32.mrb[0].mxu0
        %1233 = vmatprep.mubr.f32.mxu0 0.0
        %1234 = vmatmul.mubr.f32.gmra.mrb[0].mxu0 %v598
        %v1235 = vpop.f32.mrb[0].mxu0
        %v1236 = vadd.f32 %v318, %v1235
        %v1237 = vpop.f32.mrb[0].mxu0
        %1238 = vmatprep.mubr.f32.mxu0 0.0
        %1239 = vmatmul.mubr.f32.gmra.mrb[0].mxu0 %v601
        %v1240 = vpop.f32.mrb[0].mxu0
        %v1241 = vadd.f32 %v318, %v1240
        %v1242 = vpop.f32.mrb[0].mxu0
        %1243 = vmatprep.mubr.f32.mxu0 0.0
        %1244 = vmatmul.mubr.f32.gmra.mrb[0].mxu0 %v604
        %v1245 = vpop.f32.mrb[0].mxu0
        %v1246 = vadd.f32 %v318, %v1245
        %v1247 = vpop.f32.mrb[0].mxu0
        %1248 = vmatprep.mubr.f32.mxu0 0.0
        %1249 = vmatmul.mubr.f32.gmra.mrb[0].mxu0 %v607
        %v1250 = vpop.f32.mrb[0].mxu0
        %v1251 = vadd.f32 %v318, %v1250
        %v1252 = vpop.f32.mrb[0].mxu0
        %1253 = vmatprep.mubr.f32.mxu0 0.0
        %1254 = vmatmul.mubr.f32.gmra.mrb[0].mxu0 %v610
        %v1255 = vpop.f32.mrb[0].mxu0
        %v1256 = vadd.f32 %v318, %v1255
        %v1257 = vpop.f32.mrb[0].mxu0
        %1258 = vmatprep.mubr.f32.mxu0 0.0
        %1259 = vmatmul.mubr.f32.gmra.mrb[0].mxu0 %v613
        %v1260 = vpop.f32.mrb[0].mxu0
        %v1261 = vadd.f32 %v318, %v1260
        %v1262 = vpop.f32.mrb[0].mxu0
        %1263 = vmatprep.mubr.f32.mxu0 0.0
        %1264 = vmatmul.mubr.f32.gmra.mrb[0].mxu0 %v616
        %v1265 = vpop.f32.mrb[0].mxu0
        %v1266 = vadd.f32 %v318, %v1265
        %v1267 = vpop.f32.mrb[0].mxu0
        %1268 = vmatprep.mubr.f32.mxu0 0.0
        %1269 = vmatmul.mubr.f32.gmra.mrb[0].mxu0 %v619
        %v1270 = vpop.f32.mrb[0].mxu0
        %v1271 = vadd.f32 %v318, %v1270
        %v1272 = vpop.f32.mrb[0].mxu0
        %1273 = vmatprep.mubr.f32.mxu0 0.0
        %1274 = vmatmul.mubr.f32.gmra.mrb[0].mxu0 %v622
        %v1275 = vpop.f32.mrb[0].mxu0
        %v1276 = vadd.f32 %v318, %v1275
        %v1277 = vpop.f32.mrb[0].mxu0
        %1278 = vmatprep.mubr.f32.mxu0 0.0
        %1279 = vmatmul.mubr.f32.gmra.mrb[0].mxu0 %v625
        %v1280 = vpop.f32.mrb[0].mxu0
        %v1281 = vadd.f32 %v318, %v1280
        %v1282 = vpop.f32.mrb[0].mxu0
        %1283 = vmatprep.mubr.f32.mxu0 0.0
        %1284 = vmatmul.mubr.f32.gmra.mrb[0].mxu0 %v628
        %v1285 = vpop.f32.mrb[0].mxu0
        %v1286 = vadd.f32 %v318, %v1285
        %v1287 = vpop.f32.mrb[0].mxu0
        %1288 = vmatprep.mubr.f32.mxu0 0.0
        %1289 = vmatmul.mubr.f32.gmra.mrb[0].mxu0 %v631
        %v1290 = vpop.f32.mrb[0].mxu0
        %v1291 = vadd.f32 %v318, %v1290
        %v1292 = vpop.f32.mrb[0].mxu0
        %1293 = vmatprep.mubr.f32.mxu0 0.0
        %1294 = vmatmul.mubr.f32.gmra.mrb[0].mxu0 %v634
        %v1295 = vpop.f32.mrb[0].mxu0
        %v1296 = vadd.f32 %v318, %v1295
        %v1297 = vpop.f32.mrb[0].mxu0
        %1298 = vmatprep.mubr.f32.mxu0 0.0
        %1299 = vmatmul.mubr.f32.gmra.mrb[0].mxu0 %v637
        %v1300 = vpop.f32.mrb[0].mxu0
        %v1301 = vadd.f32 %v318, %v1300
        %v1302 = vpop.f32.mrb[0].mxu0
        %1303 = vmatprep.mubr.f32.mxu0 0.0
        %1304 = vmatmul.mubr.f32.gmra.mrb[0].mxu0 %v640
        %v1305 = vpop.f32.mrb[0].mxu0
        %v1306 = vadd.f32 %v318, %v1305
        %v1307 = vpop.f32.mrb[0].mxu0
        %1308 = vmatprep.mubr.f32.mxu0 0.0
        %1309 = vmatmul.mubr.f32.gmra.mrb[0].mxu0 %v643
        %v1310 = vpop.f32.mrb[0].mxu0
        %v1311 = vadd.f32 %v318, %v1310
        %v1312 = vpop.f32.mrb[0].mxu0
        %1313 = vmatprep.mubr.f32.mxu0 0.0
        %1314 = vmatmul.mubr.f32.gmra.mrb[0].mxu0 %v646
        %v1315 = vpop.f32.mrb[0].mxu0
        %v1316 = vadd.f32 %v318, %v1315
        %v1317 = vpop.f32.mrb[0].mxu0
        %1318 = vmatprep.mubr.f32.mxu0 0.0
        %1319 = vmatmul.mubr.f32.gmra.mrb[0].mxu0 %v649
        %v1320 = vpop.f32.mrb[0].mxu0
        %v1321 = vadd.f32 %v318, %v1320
        %v1322 = vpop.f32.mrb[0].mxu0
        %1323 = vmatprep.mubr.f32.mxu0 0.0
        %1324 = vmatmul.mubr.f32.gmra.mrb[0].mxu0 %v652
        %v1325 = vpop.f32.mrb[0].mxu0
        %v1326 = vadd.f32 %v318, %v1325
        %v1327 = vpop.f32.mrb[0].mxu0
        %1328 = vmatprep.mubr.f32.mxu0 0.0
        %1329 = vmatmul.mubr.f32.gmra.mrb[0].mxu0 %v655
        %v1330 = vpop.f32.mrb[0].mxu0
        %v1331 = vadd.f32 %v318, %v1330
        %v1332 = vpop.f32.mrb[0].mxu0
        %1333 = vmatprep.mubr.f32.mxu0 0.0
        %1334 = vmatmul.mubr.f32.gmra.mrb[0].mxu0 %v658
        %v1335 = vpop.f32.mrb[0].mxu0
        %v1336 = vadd.f32 %v318, %v1335
        %v1337 = vpop.f32.mrb[0].mxu0
        %1338 = vmatprep.mubr.f32.mxu0 0.0
        %1339 = vmatmul.mubr.f32.gmra.mrb[0].mxu0 %v661
        %v1340 = vpop.f32.mrb[0].mxu0
        %v1341 = vadd.f32 %v318, %v1340
        %v1342 = vpop.f32.mrb[0].mxu0
        %1343 = vmatprep.mubr.f32.mxu0 0.0
        %1344 = vmatmul.mubr.f32.gmra.mrb[0].mxu0 %v664
        %v1345 = vpop.f32.mrb[0].mxu0
        %v1346 = vadd.f32 %v318, %v1345
        %v1347 = vpop.f32.mrb[0].mxu0
        %1348 = vmatprep.mubr.f32.mxu0 0.0
        %1349 = vmatmul.mubr.f32.gmra.mrb[0].mxu0 %v667
        %v1350 = vpop.f32.mrb[0].mxu0
        %v1351 = vadd.f32 %v318, %v1350
        %v1352 = vpop.f32.mrb[0].mxu0
        %1353 = vmatprep.mubr.f32.mxu0 0.0
        %1354 = vmatmul.mubr.f32.gmra.mrb[0].mxu0 %v670
        %v1355 = vpop.f32.mrb[0].mxu0
        %v1356 = vadd.f32 %v318, %v1355
        %v1357 = vpop.f32.mrb[0].mxu0
        %1358 = vmatprep.mubr.f32.mxu0 0.0
        %1359 = vmatmul.mubr.f32.gmra.mrb[0].mxu0 %v673
        %v1360 = vpop.f32.mrb[0].mxu0
        %v1361 = vadd.f32 %v318, %v1360
        %v1362 = vpop.f32.mrb[0].mxu0
        %1363 = vmatprep.mubr.f32.mxu0 0.0
        %1364 = vmatmul.mubr.f32.gmra.mrb[0].mxu0 %v676
        %v1365 = vpop.f32.mrb[0].mxu0
        %v1366 = vadd.f32 %v318, %v1365
        %v1367 = vpop.f32.mrb[0].mxu0
        %1368 = vmatprep.mubr.f32.mxu0 0.0
        %1369 = vmatmul.mubr.f32.gmra.mrb[0].mxu0 %v679
        %v1370 = vpop.f32.mrb[0].mxu0
        %v1371 = vadd.f32 %v318, %v1370
        %v1372 = vpop.f32.mrb[0].mxu0
        %1373 = vmatprep.mubr.f32.mxu0 0.0
        %1374 = vmatmul.mubr.f32.gmra.mrb[0].mxu0 %v682
        %v1375 = vpop.f32.mrb[0].mxu0
        %v1376 = vadd.f32 %v318, %v1375
        %v1377 = vpop.f32.mrb[0].mxu0
        %1378 = vmatprep.mubr.f32.mxu0 0.0
        %1379 = vmatmul.mubr.f32.gmra.mrb[0].mxu0 %v685
        %v1380 = vpop.f32.mrb[0].mxu0
        %v1381 = vadd.f32 %v318, %v1380
        %v1382 = vpop.f32.mrb[0].mxu0
        %1383 = vmatprep.mubr.f32.mxu0 0.0
        %1384 = vmatmul.mubr.f32.gmra.mrb[0].mxu0 %v688
        %v1385 = vpop.f32.mrb[0].mxu0
        %v1386 = vadd.f32 %v318, %v1385
        %v1387 = vpop.f32.mrb[0].mxu0
        %1388 = vmatprep.mubr.f32.mxu0 0.0
        %1389 = vmatmul.mubr.f32.gmra.mrb[0].mxu0 %v691
        %v1390 = vpop.f32.mrb[0].mxu0
        %v1391 = vadd.f32 %v318, %v1390
        %v1392 = vpop.f32.mrb[0].mxu0
        %1393 = vmatprep.mubr.f32.mxu0 0.0
        %1394 = vmatmul.mubr.f32.gmra.mrb[0].mxu0 %v694
        %v1395 = vpop.f32.mrb[0].mxu0
        %v1396 = vadd.f32 %v318, %v1395
        %v1397 = vpop.f32.mrb[0].mxu0
        %1398 = vmatprep.mubr.f32.mxu0 0.0
        %1399 = vmatmul.mubr.f32.gmra.mrb[0].mxu0 %v697
        %v1400 = vpop.f32.mrb[0].mxu0
        %v1401 = vadd.f32 %v318, %v1400
        %v1402 = vpop.f32.mrb[0].mxu0
        %1403 = vmatprep.mubr.f32.mxu0 0.0
        %1404 = vmatmul.mubr.f32.gmra.mrb[0].mxu0 %v700
        %v1405 = vpop.f32.mrb[0].mxu0
        %v1406 = vadd.f32 %v318, %v1405
        %v1407 = vpop.f32.mrb[0].mxu0
        %1408 = vmatprep.mubr.f32.mxu0 0.0
        %1409 = vmatmul.mubr.f32.gmra.mrb[0].mxu0 %v703
        %v1410 = vpop.f32.mrb[0].mxu0
        %v1411 = vadd.f32 %v318, %v1410
        %v1412 = vpop.f32.mrb[0].mxu0
        %1413 = vdwg.mxu0
        %1414 = vst [vmem:[%s164] sm:$0xff] %v776
        %1415 = vst [vmem:[%s164 + $0x8] sm:$0xff] %v781
        %1416 = vst [vmem:[%s164 + $0x10] sm:$0xff] %v786
        %1417 = vst [vmem:[%s164 + $0x18] sm:$0xff] %v791
        %1418 = vst [vmem:[%s164 + $0x20] sm:$0xff] %v796
        %1419 = vst [vmem:[%s164 + $0x28] sm:$0xff] %v801
        %1420 = vst [vmem:[%s164 + $0x30] sm:$0xff] %v806
        %1421 = vst [vmem:[%s164 + $0x38] sm:$0xff] %v811
        %1422 = vst [vmem:[%s164 + $0x40] sm:$0xff] %v816
        %1423 = vst [vmem:[%s164 + $0x48] sm:$0xff] %v821
        %1424 = vst [vmem:[%s164 + $0x50] sm:$0xff] %v826
        %1425 = vst [vmem:[%s164 + $0x58] sm:$0xff] %v831
        %1426 = vst [vmem:[%s164 + $0x60] sm:$0xff] %v836
        %1427 = vst [vmem:[%s164 + $0x68] sm:$0xff] %v841
        %1428 = vst [vmem:[%s164 + $0x70] sm:$0xff] %v846
        %1429 = vst [vmem:[%s164 + $0x78] sm:$0xff] %v851
        %1430 = vst [vmem:[%s164 + $0x80] sm:$0xff] %v856
        %1431 = vst [vmem:[%s164 + $0x88] sm:$0xff] %v861
        %1432 = vst [vmem:[%s164 + $0x90] sm:$0xff] %v866
        %1433 = vst [vmem:[%s164 + $0x98] sm:$0xff] %v871
        %1434 = vst [vmem:[%s164 + $0xa0] sm:$0xff] %v876
        %1435 = vst [vmem:[%s164 + $0xa8] sm:$0xff] %v881
        %1436 = vst [vmem:[%s164 + $0xb0] sm:$0xff] %v886
        %1437 = vst [vmem:[%s164 + $0xb8] sm:$0xff] %v891
        %1438 = vst [vmem:[%s164 + $0xc0] sm:$0xff] %v896
        %1439 = vst [vmem:[%s164 + $0xc8] sm:$0xff] %v901
        %1440 = vst [vmem:[%s164 + $0xd0] sm:$0xff] %v906
        %1441 = vst [vmem:[%s164 + $0xd8] sm:$0xff] %v911
        %1442 = vst [vmem:[%s164 + $0xe0] sm:$0xff] %v916
        %1443 = vst [vmem:[%s164 + $0xe8] sm:$0xff] %v921
        %1444 = vst [vmem:[%s164 + $0xf0] sm:$0xff] %v926
        %1445 = vst [vmem:[%s164 + $0xf8] sm:$0xff] %v931
        %1446 = vst [vmem:[%s164 + $0x100] sm:$0xff] %v936
        %1447 = vst [vmem:[%s164 + $0x108] sm:$0xff] %v941
        %1448 = vst [vmem:[%s164 + $0x110] sm:$0xff] %v946
        %1449 = vst [vmem:[%s164 + $0x118] sm:$0xff] %v951
        %1450 = vst [vmem:[%s164 + $0x120] sm:$0xff] %v956
        %1451 = vst [vmem:[%s164 + $0x128] sm:$0xff] %v961
        %1452 = vst [vmem:[%s164 + $0x130] sm:$0xff] %v966
        %1453 = vst [vmem:[%s164 + $0x138] sm:$0xff] %v971
        %1454 = vst [vmem:[%s164 + $0x140] sm:$0xff] %v976
        %1455 = vst [vmem:[%s164 + $0x148] sm:$0xff] %v981
        %1456 = vst [vmem:[%s164 + $0x150] sm:$0xff] %v986
        %1457 = vst [vmem:[%s164 + $0x158] sm:$0xff] %v991
        %1458 = vst [vmem:[%s164 + $0x160] sm:$0xff] %v996
        %1459 = vst [vmem:[%s164 + $0x168] sm:$0xff] %v1001
        %1460 = vst [vmem:[%s164 + $0x170] sm:$0xff] %v1006
        %1461 = vst [vmem:[%s164 + $0x178] sm:$0xff] %v1011
        %1462 = vst [vmem:[%s164 + $0x180] sm:$0xff] %v1016
        %1463 = vst [vmem:[%s164 + $0x188] sm:$0xff] %v1021
        %1464 = vst [vmem:[%s164 + $0x190] sm:$0xff] %v1026
        %1465 = vst [vmem:[%s164 + $0x198] sm:$0xff] %v1031
        %1466 = vst [vmem:[%s164 + $0x1a0] sm:$0xff] %v1036
        %1467 = vst [vmem:[%s164 + $0x1a8] sm:$0xff] %v1041
        %1468 = vst [vmem:[%s164 + $0x1b0] sm:$0xff] %v1046
        %1469 = vst [vmem:[%s164 + $0x1b8] sm:$0xff] %v1051
        %1470 = vst [vmem:[%s164 + $0x1c0] sm:$0xff] %v1056
        %1471 = vst [vmem:[%s164 + $0x1c8] sm:$0xff] %v1061
        %1472 = vst [vmem:[%s164 + $0x1d0] sm:$0xff] %v1066
        %1473 = vst [vmem:[%s164 + $0x1d8] sm:$0xff] %v1071
        %1474 = vst [vmem:[%s164 + $0x1e0] sm:$0xff] %v1076
        %1475 = vst [vmem:[%s164 + $0x1e8] sm:$0xff] %v1081
        %1476 = vst [vmem:[%s164 + $0x1f0] sm:$0xff] %v1086
        %1477 = vst [vmem:[%s164 + $0x1f8] sm:$0xff] %v1091
        %1478 = vst [vmem:[%s164 + $0x200] sm:$0xff] %v1096
        %1479 = vst [vmem:[%s164 + $0x208] sm:$0xff] %v1101
        %1480 = vst [vmem:[%s164 + $0x210] sm:$0xff] %v1106
        %1481 = vst [vmem:[%s164 + $0x218] sm:$0xff] %v1111
        %1482 = vst [vmem:[%s164 + $0x220] sm:$0xff] %v1116
        %1483 = vst [vmem:[%s164 + $0x228] sm:$0xff] %v1121
        %1484 = vst [vmem:[%s164 + $0x230] sm:$0xff] %v1126
        %1485 = vst [vmem:[%s164 + $0x238] sm:$0xff] %v1131
        %1486 = vst [vmem:[%s164 + $0x240] sm:$0xff] %v1136
        %1487 = vst [vmem:[%s164 + $0x248] sm:$0xff] %v1141
        %1488 = vst [vmem:[%s164 + $0x250] sm:$0xff] %v1146
        %1489 = vst [vmem:[%s164 + $0x258] sm:$0xff] %v1151
        %1490 = vst [vmem:[%s164 + $0x260] sm:$0xff] %v1156
        %1491 = vst [vmem:[%s164 + $0x268] sm:$0xff] %v1161
        %1492 = vst [vmem:[%s164 + $0x270] sm:$0xff] %v1166
        %1493 = vst [vmem:[%s164 + $0x278] sm:$0xff] %v1171
        %1494 = vst [vmem:[%s164 + $0x280] sm:$0xff] %v1176
        %1495 = vst [vmem:[%s164 + $0x288] sm:$0xff] %v1181
        %1496 = vst [vmem:[%s164 + $0x290] sm:$0xff] %v1186
        %1497 = vst [vmem:[%s164 + $0x298] sm:$0xff] %v1191
        %1498 = vst [vmem:[%s164 + $0x2a0] sm:$0xff] %v1196
        %1499 = vst [vmem:[%s164 + $0x2a8] sm:$0xff] %v1201
        %1500 = vst [vmem:[%s164 + $0x2b0] sm:$0xff] %v1206
        %1501 = vst [vmem:[%s164 + $0x2b8] sm:$0xff] %v1211
        %1502 = vst [vmem:[%s164 + $0x2c0] sm:$0xff] %v1216
        %1503 = vst [vmem:[%s164 + $0x2c8] sm:$0xff] %v1221
        %1504 = vst [vmem:[%s164 + $0x2d0] sm:$0xff] %v1226
        %1505 = vst [vmem:[%s164 + $0x2d8] sm:$0xff] %v1231
        %1506 = vst [vmem:[%s164 + $0x2e0] sm:$0xff] %v1236
        %1507 = vst [vmem:[%s164 + $0x2e8] sm:$0xff] %v1241
        %1508 = vst [vmem:[%s164 + $0x2f0] sm:$0xff] %v1246
        %1509 = vst [vmem:[%s164 + $0x2f8] sm:$0xff] %v1251
        %1510 = vst [vmem:[%s164 + $0x300] sm:$0xff] %v1256
        %1511 = vst [vmem:[%s164 + $0x308] sm:$0xff] %v1261
        %1512 = vst [vmem:[%s164 + $0x310] sm:$0xff] %v1266
        %1513 = vst [vmem:[%s164 + $0x318] sm:$0xff] %v1271
        %1514 = vst [vmem:[%s164 + $0x320] sm:$0xff] %v1276
        %1515 = vst [vmem:[%s164 + $0x328] sm:$0xff] %v1281
        %1516 = vst [vmem:[%s164 + $0x330] sm:$0xff] %v1286
        %1517 = vst [vmem:[%s164 + $0x338] sm:$0xff] %v1291
        %1518 = vst [vmem:[%s164 + $0x340] sm:$0xff] %v1296
        %1519 = vst [vmem:[%s164 + $0x348] sm:$0xff] %v1301
        %1520 = vst [vmem:[%s164 + $0x350] sm:$0xff] %v1306
        %1521 = vst [vmem:[%s164 + $0x358] sm:$0xff] %v1311
        %1522 = vst [vmem:[%s164 + $0x360] sm:$0xff] %v1316
        %1523 = vst [vmem:[%s164 + $0x368] sm:$0xff] %v1321
        %1524 = vst [vmem:[%s164 + $0x370] sm:$0xff] %v1326
        %1525 = vst [vmem:[%s164 + $0x378] sm:$0xff] %v1331
        %1526 = vst [vmem:[%s164 + $0x380] sm:$0xff] %v1336
        %1527 = vst [vmem:[%s164 + $0x388] sm:$0xff] %v1341
        %1528 = vst [vmem:[%s164 + $0x390] sm:$0xff] %v1346
        %1529 = vst [vmem:[%s164 + $0x398] sm:$0xff] %v1351
        %1530 = vst [vmem:[%s164 + $0x3a0] sm:$0xff] %v1356
        %1531 = vst [vmem:[%s164 + $0x3a8] sm:$0xff] %v1361
        %1532 = vst [vmem:[%s164 + $0x3b0] sm:$0xff] %v1366
        %1533 = vst [vmem:[%s164 + $0x3b8] sm:$0xff] %v1371
        %1534 = vst [vmem:[%s164 + $0x3c0] sm:$0xff] %v1376
        %1535 = vst [vmem:[%s164 + $0x3c8] sm:$0xff] %v1381
        %1536 = vst [vmem:[%s164 + $0x3d0] sm:$0xff] %v1386
        %1537 = vst [vmem:[%s164 + $0x3d8] sm:$0xff] %v1391
        %1538 = vst [vmem:[%s164 + $0x3e0] sm:$0xff] %v1396
        %1539 = vst [vmem:[%s164 + $0x3e8] sm:$0xff] %v1401
        %1540 = vst [vmem:[%s164 + $0x3f0] sm:$0xff] %v1406
        %1541 = vst [vmem:[%s164 + $0x3f8] sm:$0xff] %v1411
        %s1542 = sand.u32 %s93, 1
        %s1543 = scalar_lea.sflag [#allocation3], %s1542
        %s1544 = sand.u32 %s93, 1
        %s1545 = smul.addr %s1544, 1024
        %s1546 = scalar_lea.vmem [#allocation2], %s1545
        // Predicated region
        $region33: #{tpu_custom_call.1} parent=31 // pred_check
          %p1547 = pneg %p103
        $region34: #{tpu_custom_call.1} parent=31 // pred_check_branch
          %1549 = sbr.rel (%p1547) target = $region36
        $region35: #{tpu_custom_call.1} parent=31 // pred_region
          %s1550 = smul.u32 128, %s17
          %s1552 = ssub.s32 16384, 16384
          %1553 = vsyncadd %s1543, %s1552
          %s1554 = smul.addr %s1550, 128
          %s1555 = scalar_lea.hbm %s3, %s1554
          %s1556 = sshll.u32 %s1546, 4
          %s1557 = int_to_ptr.vmem [resolvable:$true] %s1556
          %1562 = dma.vmem_to_hbm [thread:$0]  %s1557, 16384, %s1555, %s1543, 128, 128, 8
        $region36: #{tpu_custom_call.1} parent=31 // pred_fallthru
          _
      $region32: #{tpu_custom_call.1} parent=5 // pred_fallthru
        _
      %p1563 = scmp.le.s32.totalorder 2, %s12
      // Predicated region
      $region37: #{tpu_custom_call.1} parent=5 // pred_check
        %p1564 = pneg %p1563
      $region38: #{tpu_custom_call.1} parent=5 // pred_check_branch
        %1566 = sbr.rel (%p1564) target = $region40
      $region39: #{tpu_custom_call.1} parent=5 // pred_region
        %s1567 = ssub.s32 %s12, 2
        // Predicated region
        $region41: #{tpu_custom_call.1} parent=39 // pred_check
          %p1568 = pneg %p109
        $region42: #{tpu_custom_call.1} parent=39 // pred_check_branch
          %1570 = sbr.rel (%p1568) target = $region44
        $region43: #{tpu_custom_call.1} parent=39 // pred_region
          %s1571 = sand.u32 %s94, 1
          %s1572 = scalar_lea.sflag [#allocation3], %s1571
          %s1573 = sand.u32 %s94, 1
          %s1574 = smul.addr %s1573, 1024
          %s1575 = scalar_lea.vmem [#allocation2], %s1574
          %1576 = dma.done %s1572, 16384
        $region44: #{tpu_custom_call.1} parent=39 // pred_fallthru
          _
      $region40: #{tpu_custom_call.1} parent=5 // pred_fallthru
        _
    $region6: #{tpu_custom_call.1} parent=1 // loop_footer
      %s16 = sadd.s32 1, %s12
    $region7: #{tpu_custom_call.1} parent=1 // loop_footer_branch
      %11 = sbr.rel target = $region3
    $region8: #{tpu_custom_call.1} parent=1 // loop_exit
      _
    %1577 = vsyncpa [#allocation3], 1
    %s1578 = scalar_lea.sflag [#allocation3], 1
    %1579 = vsyncpa %s1578, 1

</llo_original>
